<compile_context>
chip_gen: v7x
topology: tpu7x:2x2x1
jax: 0.10.0
libtpu: 0.0.40
codegen_flags: <defaults>
</compile_context>

<pallas_src>
import jax
import jax.numpy as jnp
from jax.experimental import pallas as pl
from jax.experimental.pallas import tpu as pltpu


BB = 8  # batch rows per grid step == one full sublane tile


# --------------------------------------------------------------------------
# Pallas kernel: 2-layer LSTM + MLP grammar scorer (one batch block)
# --------------------------------------------------------------------------
def _grammar_kernel(
    x_ref,     # [T, BB, C]   time-major domain_sequences block
    wih0_ref,  # [C, 4H]      layer-0 input->gates (transposed vs torch)
    wg_ref,    # [3H, 4H]     rows: [whh0 ; wih1 ; whh1]
    bcat_ref,  # [2, 4H]      rows: [b0 ; b1]  (each = b_ih + b_hh)
    ws1_ref,   # [H, H2]      scorer linear 1
    bs1_ref,   # [1, H2]
    ws2_ref,   # [1, H2]      scorer linear 2, stored as a row
    bs2_ref,   # [1, 1]
    out_ref,   # [T, BB]      grammar scores (time-major; wrapper transposes)
):
    T, B, C = x_ref.shape
    H4 = wih0_ref.shape[1]
    H = H4 // 4
    H2 = ws1_ref.shape[1]

    x = x_ref[...].astype(jnp.float32)
    wih0 = wih0_ref[...]
    whh0 = wg_ref[0:H, :]
    w1 = wg_ref[H:3 * H, :]          # [2H, 4H] fused [wih1 ; whh1]
    b0 = bcat_ref[0:1, :]
    b1 = bcat_ref[1:2, :]

    # Hoisted layer-0 input projection: one MXU op for all timesteps,
    # layer-0 bias folded in. Only the h-path matmul remains serial.
    xproj = (
        jnp.dot(x.reshape(T * B, C), wih0, preferred_element_type=jnp.float32)
        + b0
    ).reshape(T, B, H4)

    def activate(gates, c):
        # Full-vreg sigmoid/tanh (2 EUP pushes instead of 4 narrow ones),
        # then slice the PyTorch-ordered gates (i, f, g, o).
        sig = jax.nn.sigmoid(gates)
        th = jnp.tanh(gates)
        i = sig[:, 0 * H:1 * H]
        f = sig[:, 1 * H:2 * H]
        g = th[:, 2 * H:3 * H]
        o = sig[:, 3 * H:4 * H]
        c_new = f * c + i * g
        h_new = o * jnp.tanh(c_new)
        return h_new, c_new

    h0 = jnp.zeros((B, H), jnp.float32)
    c0 = jnp.zeros((B, H), jnp.float32)
    h1 = jnp.zeros((B, H), jnp.float32)
    c1 = jnp.zeros((B, H), jnp.float32)

    outs = []
    for t in range(T):  # T is small & static -> unrolled recurrence
        # Layer 0: gates = precomputed input proj + h @ whh0
        g0 = xproj[t] + jnp.dot(h0, whh0, preferred_element_type=jnp.float32)
        h0, c0 = activate(g0, c0)
        # Layer 1: single fused matmul over concat([h0, h1])
        g1 = (
            jnp.dot(jnp.concatenate([h0, h1], axis=1), w1,
                    preferred_element_type=jnp.float32)
            + b1
        )
        h1, c1 = activate(g1, c1)
        outs.append(h1)

    # [T, B, H] -> [T*B, H] is a sublane-only merge (no batch/time interleave).
    lstm_out = jnp.stack(outs, axis=0).reshape(T * B, H)

    # Scorer: Linear -> ReLU (MXU), then width-1 Linear via VPU mul + reduce.
    hid = jnp.maximum(
        jnp.dot(lstm_out, ws1_ref[...], preferred_element_type=jnp.float32)
        + bs1_ref[...],
        0.0,
    )                                           # [T*B, H2]
    hid3 = hid.reshape(T, B, H2)
    logit = jnp.sum(hid3 * ws2_ref[...], axis=-1) + bs2_ref[...]
    out_ref[...] = jax.nn.sigmoid(logit)        # [T, B]


# --------------------------------------------------------------------------
# Wrapper
# --------------------------------------------------------------------------
@jax.jit
def domain_grammar_forward(domain_sequences, params):
    """domain_sequences: [B, T, C] float32 -> grammar_scores [B, T] float32."""
    B, T, C = domain_sequences.shape
    H = params["whh0"].shape[0]
    H2 = params["ws1"].shape[1]
    H4 = 4 * H

    # Pad batch up to full sublane tiles; padded rows are sliced off at the end.
    Bp = ((B + BB - 1) // BB) * BB
    x = domain_sequences.astype(jnp.float32)
    if Bp != B:
        x = jnp.pad(x, ((0, Bp - B), (0, 0), (0, 0)))
    x_tbc = jnp.transpose(x, (1, 0, 2))          # [T, Bp, C] time-major

    # Pre-pack parameters into a few lane-aligned operands (fewer DMAs).
    wg = jnp.concatenate(
        [params["whh0"], params["wih1"], params["whh1"]], axis=0)   # [3H, 4H]
    bcat = jnp.concatenate([params["b0"], params["b1"]], axis=0)    # [2, 4H]
    ws2row = params["ws2"].T                                        # [1, H2]

    weights = (params["wih0"], wg, bcat, params["ws1"], params["bs1"],
               ws2row, params["bs2"])

    num_blocks = Bp // BB

    def _full(arr):
        nd = arr.ndim
        return pl.BlockSpec(arr.shape, lambda i, _nd=nd: (0,) * _nd)

    # Advisory cost hint: this kernel is launch/latency bound, not FLOP bound.
    flops = 2 * T * Bp * (C * H4 + H * H4 + 2 * H * H4 + H * H2 + H2)
    transcendentals = T * Bp * 2 * (2 * H4 + H) + T * Bp
    bytes_accessed = 4 * (x_tbc.size + sum(int(w.size) for w in weights)
                          + T * Bp)

    out_tb = pl.pallas_call(
        _grammar_kernel,
        out_shape=jax.ShapeDtypeStruct((T, Bp), jnp.float32),
        grid=(num_blocks,),
        in_specs=[pl.BlockSpec((T, BB, C), lambda i: (0, i, 0))]
                 + [_full(w) for w in weights],
        out_specs=pl.BlockSpec((T, BB), lambda i: (0, i)),
        compiler_params=pltpu.CompilerParams(
            dimension_semantics=("parallel",)),
        cost_estimate=pl.CostEstimate(
            flops=flops,
            transcendentals=transcendentals,
            bytes_accessed=bytes_accessed),
    )(x_tbc, *weights)

    return out_tb.T[:B]                          # [B, T]


# --------------------------------------------------------------------------
# Deterministic parameter init (PyTorch-style U(-1/sqrt(H), 1/sqrt(H)))
# --------------------------------------------------------------------------
def init_params(key, hidden_dim, num_domain_types):
    H, C = hidden_dim, num_domain_types
    k = 1.0 / jnp.sqrt(jnp.float32(H))
    keys = jax.random.split(key, 16)

    def u(rk, shape):
        return jax.random.uniform(rk, shape, jnp.float32, -k, k)

    # Weights stored pre-transposed: [in_features, out_features].
    params = {
        "wih0": u(keys[0], (C, 4 * H)),
        "whh0": u(keys[1], (H, 4 * H)),
        "b0":   (u(keys[2], (1, 4 * H)) + u(keys[3], (1, 4 * H))),  # b_ih + b_hh
        "wih1": u(keys[4], (H, 4 * H)),
        "whh1": u(keys[5], (H, 4 * H)),
        "b1":   (u(keys[6], (1, 4 * H)) + u(keys[7], (1, 4 * H))),
        "ws1":  u(keys[8], (H, H // 2)),
        "bs1":  u(keys[9], (1, H // 2)),
        "ws2":  u(keys[10], (H // 2, 1)),
        "bs2":  u(keys[11], (1, 1)),
    }
    return params


# --------------------------------------------------------------------------
# Pure-JAX reference (same math) for a correctness check
# --------------------------------------------------------------------------
def reference_forward(x, p):
    B, T, C = x.shape
    H = p["whh0"].shape[0]

    def cell(xt, h, c, wih, whh, b):
        g = xt @ wih + h @ whh + b
        i = jax.nn.sigmoid(g[:, :H])
        f = jax.nn.sigmoid(g[:, H:2 * H])
        gg = jnp.tanh(g[:, 2 * H:3 * H])
        o = jax.nn.sigmoid(g[:, 3 * H:])
        c = f * c + i * gg
        return o * jnp.tanh(c), c

    h0 = c0 = h1 = c1 = jnp.zeros((B, H), jnp.float32)
    outs = []
    for t in range(T):
        h0, c0 = cell(x[:, t, :], h0, c0, p["wih0"], p["whh0"], p["b0"])
        h1, c1 = cell(h0, h1, c1, p["wih1"], p["whh1"], p["b1"])
        outs.append(h1)
    lstm_out = jnp.stack(outs, axis=1)
    hid = jnp.maximum(lstm_out @ p["ws1"] + p["bs1"], 0.0)
    return jax.nn.sigmoid(hid @ p["ws2"] + p["bs2"])[..., 0]


# --------------------------------------------------------------------------
if __name__ == "__main__":
    hidden_dim = 32
    num_domain_types = 4
    batch_size = 2
    max_domains = 8   # == max number of predicted domains over the batch

    key = jax.random.PRNGKey(0)
    k_param, k_data = jax.random.split(key)

    params = init_params(k_param, hidden_dim, num_domain_types)

    # Glue: the PyTorch forward builds domain_sequences[b, i] = pred['class_probs'].
    # Build the equivalent dense [B, T, C] tensor here (softmaxed random logits;
    # second sequence has fewer domains -> trailing rows stay zero, as in torch.zeros).
    logits = jax.random.normal(k_data, (batch_size, max_domains, num_domain_types))
    domain_sequences = jax.nn.softmax(logits, axis=-1)
    valid = jnp.array([max_domains, max_domains - 3])          # per-batch domain counts
    mask = (jnp.arange(max_domains)[None, :] < valid[:, None]).astype(jnp.float32)
    domain_sequences = domain_sequences * mask[..., None]

    out = domain_grammar_forward(domain_sequences, params)
    out = jax.block_until_ready(out)

    ref = reference_forward(domain_sequences, params)
    assert out.shape == (batch_size, max_domains)
    assert jnp.allclose(out, ref, atol=1e-5, rtol=1e-5), (out, ref)

    print("KERNEL_OK")
</pallas_src>

<mosaic_0001>
module attributes {stable_mosaic.version = 11 : i64} {
  func.func @_grammar_kernel(%arg0: i32, %arg1: memref<8x8x4xf32, #tpu.memory_space<vmem>>, %arg2: memref<4x128xf32, #tpu.memory_space<vmem>>, %arg3: memref<96x128xf32, #tpu.memory_space<vmem>>, %arg4: memref<2x128xf32, #tpu.memory_space<vmem>>, %arg5: memref<32x16xf32, #tpu.memory_space<vmem>>, %arg6: memref<1x16xf32, #tpu.memory_space<vmem>>, %arg7: memref<1x16xf32, #tpu.memory_space<vmem>>, %arg8: memref<1x1xf32, #tpu.memory_space<vmem>>, %arg9: memref<8x8xf32, #tpu.memory_space<vmem>>) attributes {dimension_semantics = [#tpu.dimension_semantics<parallel>], iteration_bounds = array<i64: 1>, scalar_prefetch = 0 : i64, scratch_operands = 0 : i64, tpu.core_type = #tpu.core_type<tc>, window_params = [{transform_indices = @transform_0, window_bounds = array<i64: 8, 8, 4>}, {pipeline_mode = #tpu.pipeline_mode<synchronous>, transform_indices = @transform_1, window_bounds = array<i64: 4, 128>}, {pipeline_mode = #tpu.pipeline_mode<synchronous>, transform_indices = @transform_2, window_bounds = array<i64: 96, 128>}, {pipeline_mode = #tpu.pipeline_mode<synchronous>, transform_indices = @transform_3, window_bounds = array<i64: 2, 128>}, {pipeline_mode = #tpu.pipeline_mode<synchronous>, transform_indices = @transform_4, window_bounds = array<i64: 32, 16>}, {pipeline_mode = #tpu.pipeline_mode<synchronous>, transform_indices = @transform_5, window_bounds = array<i64: 1, 16>}, {pipeline_mode = #tpu.pipeline_mode<synchronous>, transform_indices = @transform_6, window_bounds = array<i64: 1, 16>}, {pipeline_mode = #tpu.pipeline_mode<synchronous>, transform_indices = @transform_7, window_bounds = array<i64: 1, 1>}, {transform_indices = @transform_8, window_bounds = array<i64: 8, 8>}]} {
    %c0 = arith.constant 0 : index
    %c0_0 = arith.constant 0 : index
    %c0_1 = arith.constant 0 : index
    %0 = vector.load %arg1[%c0, %c0_0, %c0_1] : memref<8x8x4xf32, #tpu.memory_space<vmem>>, vector<8x8x4xf32>
    %c0_2 = arith.constant 0 : index
    %c0_3 = arith.constant 0 : index
    %1 = vector.load %arg2[%c0_2, %c0_3] : memref<4x128xf32, #tpu.memory_space<vmem>>, vector<4x128xf32>
    %c0_4 = arith.constant 0 : index
    %c0_5 = arith.constant 0 : index
    %2 = vector.load %arg3[%c0_4, %c0_5] : memref<96x128xf32, #tpu.memory_space<vmem>>, vector<32x128xf32>
    %c32 = arith.constant 32 : index
    %c0_6 = arith.constant 0 : index
    %3 = vector.load %arg3[%c32, %c0_6] : memref<96x128xf32, #tpu.memory_space<vmem>>, vector<64x128xf32>
    %c0_7 = arith.constant 0 : index
    %c0_8 = arith.constant 0 : index
    %4 = vector.load %arg4[%c0_7, %c0_8] : memref<2x128xf32, #tpu.memory_space<vmem>>, vector<1x128xf32>
    %c1 = arith.constant 1 : index
    %c0_9 = arith.constant 0 : index
    %5 = vector.load %arg4[%c1, %c0_9] : memref<2x128xf32, #tpu.memory_space<vmem>>, vector<1x128xf32>
    %6 = vector.shape_cast %0 : vector<8x8x4xf32> to vector<64x4xf32>
    %cst = arith.constant dense<0.000000e+00> : vector<64x128xf32>
    %7 = tpu.matmul %6, %1, %cst {dimension_numbers = #tpu.dot_dimension_numbers<[1], [0], [0], [1], [0, 0, 1, 1], [], []>} : vector<64x4xf32>, vector<4x128xf32>, vector<64x128xf32> -> vector<64x128xf32>
    %8 = vector.broadcast %4 : vector<1x128xf32> to vector<64x128xf32>
    %9 = arith.addf %7, %8 : vector<64x128xf32>
    %10 = vector.shape_cast %9 : vector<64x128xf32> to vector<8x8x128xf32>
    %cst_10 = arith.constant 0.000000e+00 : f32
    %11 = vector.broadcast %cst_10 : f32 to vector<8x32xf32>
    %cst_11 = arith.constant 0.000000e+00 : f32
    %12 = vector.broadcast %cst_11 : f32 to vector<8x32xf32>
    %cst_12 = arith.constant 0.000000e+00 : f32
    %13 = vector.broadcast %cst_12 : f32 to vector<8x32xf32>
    %cst_13 = arith.constant 0.000000e+00 : f32
    %14 = vector.broadcast %cst_13 : f32 to vector<8x32xf32>
    %15 = vector.extract_strided_slice %10 {offsets = [0, 0, 0], sizes = [1, 8, 128], strides = [1, 1, 1]} : vector<8x8x128xf32> to vector<1x8x128xf32>
    %16 = vector.shape_cast %15 : vector<1x8x128xf32> to vector<8x128xf32>
    %cst_14 = arith.constant dense<0.000000e+00> : vector<8x128xf32>
    %17 = tpu.matmul %11, %2, %cst_14 {dimension_numbers = #tpu.dot_dimension_numbers<[1], [0], [0], [1], [0, 0, 1, 1], [], []>} : vector<8x32xf32>, vector<32x128xf32>, vector<8x128xf32> -> vector<8x128xf32>
    %18 = arith.addf %16, %17 : vector<8x128xf32>
    %19 = arith.negf %18 : vector<8x128xf32>
    %20 = math.exp %19 : vector<8x128xf32>
    %cst_15 = arith.constant 1.000000e+00 : f32
    %21 = vector.broadcast %cst_15 : f32 to vector<8x128xf32>
    %22 = arith.addf %21, %20 : vector<8x128xf32>
    %23 = arith.divf %21, %22 : vector<8x128xf32>
    %24 = math.tanh %18 : vector<8x128xf32>
    %25 = vector.extract_strided_slice %23 {offsets = [0, 0], sizes = [8, 32], strides = [1, 1]} : vector<8x128xf32> to vector<8x32xf32>
    %26 = vector.extract_strided_slice %23 {offsets = [0, 32], sizes = [8, 32], strides = [1, 1]} : vector<8x128xf32> to vector<8x32xf32>
    %27 = vector.extract_strided_slice %24 {offsets = [0, 64], sizes = [8, 32], strides = [1, 1]} : vector<8x128xf32> to vector<8x32xf32>
    %28 = vector.extract_strided_slice %23 {offsets = [0, 96], sizes = [8, 32], strides = [1, 1]} : vector<8x128xf32> to vector<8x32xf32>
    %29 = arith.mulf %26, %12 : vector<8x32xf32>
    %30 = arith.mulf %25, %27 : vector<8x32xf32>
    %31 = arith.addf %29, %30 : vector<8x32xf32>
    %32 = math.tanh %31 : vector<8x32xf32>
    %33 = arith.mulf %28, %32 : vector<8x32xf32>
    %34 = tpu.concatenate %33, %13 in 1 : vector<8x32xf32>, vector<8x32xf32> -> vector<8x64xf32>
    %cst_16 = arith.constant dense<0.000000e+00> : vector<8x128xf32>
    %35 = tpu.matmul %34, %3, %cst_16 {dimension_numbers = #tpu.dot_dimension_numbers<[1], [0], [0], [1], [0, 0, 1, 1], [], []>} : vector<8x64xf32>, vector<64x128xf32>, vector<8x128xf32> -> vector<8x128xf32>
    %36 = vector.broadcast %5 : vector<1x128xf32> to vector<8x128xf32>
    %37 = arith.addf %35, %36 : vector<8x128xf32>
    %38 = arith.negf %37 : vector<8x128xf32>
    %39 = math.exp %38 : vector<8x128xf32>
    %cst_17 = arith.constant 1.000000e+00 : f32
    %40 = vector.broadcast %cst_17 : f32 to vector<8x128xf32>
    %41 = arith.addf %40, %39 : vector<8x128xf32>
    %42 = arith.divf %40, %41 : vector<8x128xf32>
    %43 = math.tanh %37 : vector<8x128xf32>
    %44 = vector.extract_strided_slice %42 {offsets = [0, 0], sizes = [8, 32], strides = [1, 1]} : vector<8x128xf32> to vector<8x32xf32>
    %45 = vector.extract_strided_slice %42 {offsets = [0, 32], sizes = [8, 32], strides = [1, 1]} : vector<8x128xf32> to vector<8x32xf32>
    %46 = vector.extract_strided_slice %43 {offsets = [0, 64], sizes = [8, 32], strides = [1, 1]} : vector<8x128xf32> to vector<8x32xf32>
    %47 = vector.extract_strided_slice %42 {offsets = [0, 96], sizes = [8, 32], strides = [1, 1]} : vector<8x128xf32> to vector<8x32xf32>
    %48 = arith.mulf %45, %14 : vector<8x32xf32>
    %49 = arith.mulf %44, %46 : vector<8x32xf32>
    %50 = arith.addf %48, %49 : vector<8x32xf32>
    %51 = math.tanh %50 : vector<8x32xf32>
    %52 = arith.mulf %47, %51 : vector<8x32xf32>
    %53 = vector.extract_strided_slice %10 {offsets = [1, 0, 0], sizes = [1, 8, 128], strides = [1, 1, 1]} : vector<8x8x128xf32> to vector<1x8x128xf32>
    %54 = vector.shape_cast %53 : vector<1x8x128xf32> to vector<8x128xf32>
    %cst_18 = arith.constant dense<0.000000e+00> : vector<8x128xf32>
    %55 = tpu.matmul %33, %2, %cst_18 {dimension_numbers = #tpu.dot_dimension_numbers<[1], [0], [0], [1], [0, 0, 1, 1], [], []>} : vector<8x32xf32>, vector<32x128xf32>, vector<8x128xf32> -> vector<8x128xf32>
    %56 = arith.addf %54, %55 : vector<8x128xf32>
    %57 = arith.negf %56 : vector<8x128xf32>
    %58 = math.exp %57 : vector<8x128xf32>
    %cst_19 = arith.constant 1.000000e+00 : f32
    %59 = vector.broadcast %cst_19 : f32 to vector<8x128xf32>
    %60 = arith.addf %59, %58 : vector<8x128xf32>
    %61 = arith.divf %59, %60 : vector<8x128xf32>
    %62 = math.tanh %56 : vector<8x128xf32>
    %63 = vector.extract_strided_slice %61 {offsets = [0, 0], sizes = [8, 32], strides = [1, 1]} : vector<8x128xf32> to vector<8x32xf32>
    %64 = vector.extract_strided_slice %61 {offsets = [0, 32], sizes = [8, 32], strides = [1, 1]} : vector<8x128xf32> to vector<8x32xf32>
    %65 = vector.extract_strided_slice %62 {offsets = [0, 64], sizes = [8, 32], strides = [1, 1]} : vector<8x128xf32> to vector<8x32xf32>
    %66 = vector.extract_strided_slice %61 {offsets = [0, 96], sizes = [8, 32], strides = [1, 1]} : vector<8x128xf32> to vector<8x32xf32>
    %67 = arith.mulf %64, %31 : vector<8x32xf32>
    %68 = arith.mulf %63, %65 : vector<8x32xf32>
    %69 = arith.addf %67, %68 : vector<8x32xf32>
    %70 = math.tanh %69 : vector<8x32xf32>
    %71 = arith.mulf %66, %70 : vector<8x32xf32>
    %72 = tpu.concatenate %71, %52 in 1 : vector<8x32xf32>, vector<8x32xf32> -> vector<8x64xf32>
    %cst_20 = arith.constant dense<0.000000e+00> : vector<8x128xf32>
    %73 = tpu.matmul %72, %3, %cst_20 {dimension_numbers = #tpu.dot_dimension_numbers<[1], [0], [0], [1], [0, 0, 1, 1], [], []>} : vector<8x64xf32>, vector<64x128xf32>, vector<8x128xf32> -> vector<8x128xf32>
    %74 = vector.broadcast %5 : vector<1x128xf32> to vector<8x128xf32>
    %75 = arith.addf %73, %74 : vector<8x128xf32>
    %76 = arith.negf %75 : vector<8x128xf32>
    %77 = math.exp %76 : vector<8x128xf32>
    %cst_21 = arith.constant 1.000000e+00 : f32
    %78 = vector.broadcast %cst_21 : f32 to vector<8x128xf32>
    %79 = arith.addf %78, %77 : vector<8x128xf32>
    %80 = arith.divf %78, %79 : vector<8x128xf32>
    %81 = math.tanh %75 : vector<8x128xf32>
    %82 = vector.extract_strided_slice %80 {offsets = [0, 0], sizes = [8, 32], strides = [1, 1]} : vector<8x128xf32> to vector<8x32xf32>
    %83 = vector.extract_strided_slice %80 {offsets = [0, 32], sizes = [8, 32], strides = [1, 1]} : vector<8x128xf32> to vector<8x32xf32>
    %84 = vector.extract_strided_slice %81 {offsets = [0, 64], sizes = [8, 32], strides = [1, 1]} : vector<8x128xf32> to vector<8x32xf32>
    %85 = vector.extract_strided_slice %80 {offsets = [0, 96], sizes = [8, 32], strides = [1, 1]} : vector<8x128xf32> to vector<8x32xf32>
    %86 = arith.mulf %83, %50 : vector<8x32xf32>
    %87 = arith.mulf %82, %84 : vector<8x32xf32>
    %88 = arith.addf %86, %87 : vector<8x32xf32>
    %89 = math.tanh %88 : vector<8x32xf32>
    %90 = arith.mulf %85, %89 : vector<8x32xf32>
    %91 = vector.extract_strided_slice %10 {offsets = [2, 0, 0], sizes = [1, 8, 128], strides = [1, 1, 1]} : vector<8x8x128xf32> to vector<1x8x128xf32>
    %92 = vector.shape_cast %91 : vector<1x8x128xf32> to vector<8x128xf32>
    %cst_22 = arith.constant dense<0.000000e+00> : vector<8x128xf32>
    %93 = tpu.matmul %71, %2, %cst_22 {dimension_numbers = #tpu.dot_dimension_numbers<[1], [0], [0], [1], [0, 0, 1, 1], [], []>} : vector<8x32xf32>, vector<32x128xf32>, vector<8x128xf32> -> vector<8x128xf32>
    %94 = arith.addf %92, %93 : vector<8x128xf32>
    %95 = arith.negf %94 : vector<8x128xf32>
    %96 = math.exp %95 : vector<8x128xf32>
    %cst_23 = arith.constant 1.000000e+00 : f32
    %97 = vector.broadcast %cst_23 : f32 to vector<8x128xf32>
    %98 = arith.addf %97, %96 : vector<8x128xf32>
    %99 = arith.divf %97, %98 : vector<8x128xf32>
    %100 = math.tanh %94 : vector<8x128xf32>
    %101 = vector.extract_strided_slice %99 {offsets = [0, 0], sizes = [8, 32], strides = [1, 1]} : vector<8x128xf32> to vector<8x32xf32>
    %102 = vector.extract_strided_slice %99 {offsets = [0, 32], sizes = [8, 32], strides = [1, 1]} : vector<8x128xf32> to vector<8x32xf32>
    %103 = vector.extract_strided_slice %100 {offsets = [0, 64], sizes = [8, 32], strides = [1, 1]} : vector<8x128xf32> to vector<8x32xf32>
    %104 = vector.extract_strided_slice %99 {offsets = [0, 96], sizes = [8, 32], strides = [1, 1]} : vector<8x128xf32> to vector<8x32xf32>
    %105 = arith.mulf %102, %69 : vector<8x32xf32>
    %106 = arith.mulf %101, %103 : vector<8x32xf32>
    %107 = arith.addf %105, %106 : vector<8x32xf32>
    %108 = math.tanh %107 : vector<8x32xf32>
    %109 = arith.mulf %104, %108 : vector<8x32xf32>
    %110 = tpu.concatenate %109, %90 in 1 : vector<8x32xf32>, vector<8x32xf32> -> vector<8x64xf32>
    %cst_24 = arith.constant dense<0.000000e+00> : vector<8x128xf32>
    %111 = tpu.matmul %110, %3, %cst_24 {dimension_numbers = #tpu.dot_dimension_numbers<[1], [0], [0], [1], [0, 0, 1, 1], [], []>} : vector<8x64xf32>, vector<64x128xf32>, vector<8x128xf32> -> vector<8x128xf32>
    %112 = vector.broadcast %5 : vector<1x128xf32> to vector<8x128xf32>
    %113 = arith.addf %111, %112 : vector<8x128xf32>
    %114 = arith.negf %113 : vector<8x128xf32>
    %115 = math.exp %114 : vector<8x128xf32>
    %cst_25 = arith.constant 1.000000e+00 : f32
    %116 = vector.broadcast %cst_25 : f32 to vector<8x128xf32>
    %117 = arith.addf %116, %115 : vector<8x128xf32>
    %118 = arith.divf %116, %117 : vector<8x128xf32>
    %119 = math.tanh %113 : vector<8x128xf32>
    %120 = vector.extract_strided_slice %118 {offsets = [0, 0], sizes = [8, 32], strides = [1, 1]} : vector<8x128xf32> to vector<8x32xf32>
    %121 = vector.extract_strided_slice %118 {offsets = [0, 32], sizes = [8, 32], strides = [1, 1]} : vector<8x128xf32> to vector<8x32xf32>
    %122 = vector.extract_strided_slice %119 {offsets = [0, 64], sizes = [8, 32], strides = [1, 1]} : vector<8x128xf32> to vector<8x32xf32>
    %123 = vector.extract_strided_slice %118 {offsets = [0, 96], sizes = [8, 32], strides = [1, 1]} : vector<8x128xf32> to vector<8x32xf32>
    %124 = arith.mulf %121, %88 : vector<8x32xf32>
    %125 = arith.mulf %120, %122 : vector<8x32xf32>
    %126 = arith.addf %124, %125 : vector<8x32xf32>
    %127 = math.tanh %126 : vector<8x32xf32>
    %128 = arith.mulf %123, %127 : vector<8x32xf32>
    %129 = vector.extract_strided_slice %10 {offsets = [3, 0, 0], sizes = [1, 8, 128], strides = [1, 1, 1]} : vector<8x8x128xf32> to vector<1x8x128xf32>
    %130 = vector.shape_cast %129 : vector<1x8x128xf32> to vector<8x128xf32>
    %cst_26 = arith.constant dense<0.000000e+00> : vector<8x128xf32>
    %131 = tpu.matmul %109, %2, %cst_26 {dimension_numbers = #tpu.dot_dimension_numbers<[1], [0], [0], [1], [0, 0, 1, 1], [], []>} : vector<8x32xf32>, vector<32x128xf32>, vector<8x128xf32> -> vector<8x128xf32>
    %132 = arith.addf %130, %131 : vector<8x128xf32>
    %133 = arith.negf %132 : vector<8x128xf32>
    %134 = math.exp %133 : vector<8x128xf32>
    %cst_27 = arith.constant 1.000000e+00 : f32
    %135 = vector.broadcast %cst_27 : f32 to vector<8x128xf32>
    %136 = arith.addf %135, %134 : vector<8x128xf32>
    %137 = arith.divf %135, %136 : vector<8x128xf32>
    %138 = math.tanh %132 : vector<8x128xf32>
    %139 = vector.extract_strided_slice %137 {offsets = [0, 0], sizes = [8, 32], strides = [1, 1]} : vector<8x128xf32> to vector<8x32xf32>
    %140 = vector.extract_strided_slice %137 {offsets = [0, 32], sizes = [8, 32], strides = [1, 1]} : vector<8x128xf32> to vector<8x32xf32>
    %141 = vector.extract_strided_slice %138 {offsets = [0, 64], sizes = [8, 32], strides = [1, 1]} : vector<8x128xf32> to vector<8x32xf32>
    %142 = vector.extract_strided_slice %137 {offsets = [0, 96], sizes = [8, 32], strides = [1, 1]} : vector<8x128xf32> to vector<8x32xf32>
    %143 = arith.mulf %140, %107 : vector<8x32xf32>
    %144 = arith.mulf %139, %141 : vector<8x32xf32>
    %145 = arith.addf %143, %144 : vector<8x32xf32>
    %146 = math.tanh %145 : vector<8x32xf32>
    %147 = arith.mulf %142, %146 : vector<8x32xf32>
    %148 = tpu.concatenate %147, %128 in 1 : vector<8x32xf32>, vector<8x32xf32> -> vector<8x64xf32>
    %cst_28 = arith.constant dense<0.000000e+00> : vector<8x128xf32>
    %149 = tpu.matmul %148, %3, %cst_28 {dimension_numbers = #tpu.dot_dimension_numbers<[1], [0], [0], [1], [0, 0, 1, 1], [], []>} : vector<8x64xf32>, vector<64x128xf32>, vector<8x128xf32> -> vector<8x128xf32>
    %150 = vector.broadcast %5 : vector<1x128xf32> to vector<8x128xf32>
    %151 = arith.addf %149, %150 : vector<8x128xf32>
    %152 = arith.negf %151 : vector<8x128xf32>
    %153 = math.exp %152 : vector<8x128xf32>
    %cst_29 = arith.constant 1.000000e+00 : f32
    %154 = vector.broadcast %cst_29 : f32 to vector<8x128xf32>
    %155 = arith.addf %154, %153 : vector<8x128xf32>
    %156 = arith.divf %154, %155 : vector<8x128xf32>
    %157 = math.tanh %151 : vector<8x128xf32>
    %158 = vector.extract_strided_slice %156 {offsets = [0, 0], sizes = [8, 32], strides = [1, 1]} : vector<8x128xf32> to vector<8x32xf32>
    %159 = vector.extract_strided_slice %156 {offsets = [0, 32], sizes = [8, 32], strides = [1, 1]} : vector<8x128xf32> to vector<8x32xf32>
    %160 = vector.extract_strided_slice %157 {offsets = [0, 64], sizes = [8, 32], strides = [1, 1]} : vector<8x128xf32> to vector<8x32xf32>
    %161 = vector.extract_strided_slice %156 {offsets = [0, 96], sizes = [8, 32], strides = [1, 1]} : vector<8x128xf32> to vector<8x32xf32>
    %162 = arith.mulf %159, %126 : vector<8x32xf32>
    %163 = arith.mulf %158, %160 : vector<8x32xf32>
    %164 = arith.addf %162, %163 : vector<8x32xf32>
    %165 = math.tanh %164 : vector<8x32xf32>
    %166 = arith.mulf %161, %165 : vector<8x32xf32>
    %167 = vector.extract_strided_slice %10 {offsets = [4, 0, 0], sizes = [1, 8, 128], strides = [1, 1, 1]} : vector<8x8x128xf32> to vector<1x8x128xf32>
    %168 = vector.shape_cast %167 : vector<1x8x128xf32> to vector<8x128xf32>
    %cst_30 = arith.constant dense<0.000000e+00> : vector<8x128xf32>
    %169 = tpu.matmul %147, %2, %cst_30 {dimension_numbers = #tpu.dot_dimension_numbers<[1], [0], [0], [1], [0, 0, 1, 1], [], []>} : vector<8x32xf32>, vector<32x128xf32>, vector<8x128xf32> -> vector<8x128xf32>
    %170 = arith.addf %168, %169 : vector<8x128xf32>
    %171 = arith.negf %170 : vector<8x128xf32>
    %172 = math.exp %171 : vector<8x128xf32>
    %cst_31 = arith.constant 1.000000e+00 : f32
    %173 = vector.broadcast %cst_31 : f32 to vector<8x128xf32>
    %174 = arith.addf %173, %172 : vector<8x128xf32>
    %175 = arith.divf %173, %174 : vector<8x128xf32>
    %176 = math.tanh %170 : vector<8x128xf32>
    %177 = vector.extract_strided_slice %175 {offsets = [0, 0], sizes = [8, 32], strides = [1, 1]} : vector<8x128xf32> to vector<8x32xf32>
    %178 = vector.extract_strided_slice %175 {offsets = [0, 32], sizes = [8, 32], strides = [1, 1]} : vector<8x128xf32> to vector<8x32xf32>
    %179 = vector.extract_strided_slice %176 {offsets = [0, 64], sizes = [8, 32], strides = [1, 1]} : vector<8x128xf32> to vector<8x32xf32>
    %180 = vector.extract_strided_slice %175 {offsets = [0, 96], sizes = [8, 32], strides = [1, 1]} : vector<8x128xf32> to vector<8x32xf32>
    %181 = arith.mulf %178, %145 : vector<8x32xf32>
    %182 = arith.mulf %177, %179 : vector<8x32xf32>
    %183 = arith.addf %181, %182 : vector<8x32xf32>
    %184 = math.tanh %183 : vector<8x32xf32>
    %185 = arith.mulf %180, %184 : vector<8x32xf32>
    %186 = tpu.concatenate %185, %166 in 1 : vector<8x32xf32>, vector<8x32xf32> -> vector<8x64xf32>
    %cst_32 = arith.constant dense<0.000000e+00> : vector<8x128xf32>
    %187 = tpu.matmul %186, %3, %cst_32 {dimension_numbers = #tpu.dot_dimension_numbers<[1], [0], [0], [1], [0, 0, 1, 1], [], []>} : vector<8x64xf32>, vector<64x128xf32>, vector<8x128xf32> -> vector<8x128xf32>
    %188 = vector.broadcast %5 : vector<1x128xf32> to vector<8x128xf32>
    %189 = arith.addf %187, %188 : vector<8x128xf32>
    %190 = arith.negf %189 : vector<8x128xf32>
    %191 = math.exp %190 : vector<8x128xf32>
    %cst_33 = arith.constant 1.000000e+00 : f32
    %192 = vector.broadcast %cst_33 : f32 to vector<8x128xf32>
    %193 = arith.addf %192, %191 : vector<8x128xf32>
    %194 = arith.divf %192, %193 : vector<8x128xf32>
    %195 = math.tanh %189 : vector<8x128xf32>
    %196 = vector.extract_strided_slice %194 {offsets = [0, 0], sizes = [8, 32], strides = [1, 1]} : vector<8x128xf32> to vector<8x32xf32>
    %197 = vector.extract_strided_slice %194 {offsets = [0, 32], sizes = [8, 32], strides = [1, 1]} : vector<8x128xf32> to vector<8x32xf32>
    %198 = vector.extract_strided_slice %195 {offsets = [0, 64], sizes = [8, 32], strides = [1, 1]} : vector<8x128xf32> to vector<8x32xf32>
    %199 = vector.extract_strided_slice %194 {offsets = [0, 96], sizes = [8, 32], strides = [1, 1]} : vector<8x128xf32> to vector<8x32xf32>
    %200 = arith.mulf %197, %164 : vector<8x32xf32>
    %201 = arith.mulf %196, %198 : vector<8x32xf32>
    %202 = arith.addf %200, %201 : vector<8x32xf32>
    %203 = math.tanh %202 : vector<8x32xf32>
    %204 = arith.mulf %199, %203 : vector<8x32xf32>
    %205 = vector.extract_strided_slice %10 {offsets = [5, 0, 0], sizes = [1, 8, 128], strides = [1, 1, 1]} : vector<8x8x128xf32> to vector<1x8x128xf32>
    %206 = vector.shape_cast %205 : vector<1x8x128xf32> to vector<8x128xf32>
    %cst_34 = arith.constant dense<0.000000e+00> : vector<8x128xf32>
    %207 = tpu.matmul %185, %2, %cst_34 {dimension_numbers = #tpu.dot_dimension_numbers<[1], [0], [0], [1], [0, 0, 1, 1], [], []>} : vector<8x32xf32>, vector<32x128xf32>, vector<8x128xf32> -> vector<8x128xf32>
    %208 = arith.addf %206, %207 : vector<8x128xf32>
    %209 = arith.negf %208 : vector<8x128xf32>
    %210 = math.exp %209 : vector<8x128xf32>
    %cst_35 = arith.constant 1.000000e+00 : f32
    %211 = vector.broadcast %cst_35 : f32 to vector<8x128xf32>
    %212 = arith.addf %211, %210 : vector<8x128xf32>
    %213 = arith.divf %211, %212 : vector<8x128xf32>
    %214 = math.tanh %208 : vector<8x128xf32>
    %215 = vector.extract_strided_slice %213 {offsets = [0, 0], sizes = [8, 32], strides = [1, 1]} : vector<8x128xf32> to vector<8x32xf32>
    %216 = vector.extract_strided_slice %213 {offsets = [0, 32], sizes = [8, 32], strides = [1, 1]} : vector<8x128xf32> to vector<8x32xf32>
    %217 = vector.extract_strided_slice %214 {offsets = [0, 64], sizes = [8, 32], strides = [1, 1]} : vector<8x128xf32> to vector<8x32xf32>
    %218 = vector.extract_strided_slice %213 {offsets = [0, 96], sizes = [8, 32], strides = [1, 1]} : vector<8x128xf32> to vector<8x32xf32>
    %219 = arith.mulf %216, %183 : vector<8x32xf32>
    %220 = arith.mulf %215, %217 : vector<8x32xf32>
    %221 = arith.addf %219, %220 : vector<8x32xf32>
    %222 = math.tanh %221 : vector<8x32xf32>
    %223 = arith.mulf %218, %222 : vector<8x32xf32>
    %224 = tpu.concatenate %223, %204 in 1 : vector<8x32xf32>, vector<8x32xf32> -> vector<8x64xf32>
    %cst_36 = arith.constant dense<0.000000e+00> : vector<8x128xf32>
    %225 = tpu.matmul %224, %3, %cst_36 {dimension_numbers = #tpu.dot_dimension_numbers<[1], [0], [0], [1], [0, 0, 1, 1], [], []>} : vector<8x64xf32>, vector<64x128xf32>, vector<8x128xf32> -> vector<8x128xf32>
    %226 = vector.broadcast %5 : vector<1x128xf32> to vector<8x128xf32>
    %227 = arith.addf %225, %226 : vector<8x128xf32>
    %228 = arith.negf %227 : vector<8x128xf32>
    %229 = math.exp %228 : vector<8x128xf32>
    %cst_37 = arith.constant 1.000000e+00 : f32
    %230 = vector.broadcast %cst_37 : f32 to vector<8x128xf32>
    %231 = arith.addf %230, %229 : vector<8x128xf32>
    %232 = arith.divf %230, %231 : vector<8x128xf32>
    %233 = math.tanh %227 : vector<8x128xf32>
    %234 = vector.extract_strided_slice %232 {offsets = [0, 0], sizes = [8, 32], strides = [1, 1]} : vector<8x128xf32> to vector<8x32xf32>
    %235 = vector.extract_strided_slice %232 {offsets = [0, 32], sizes = [8, 32], strides = [1, 1]} : vector<8x128xf32> to vector<8x32xf32>
    %236 = vector.extract_strided_slice %233 {offsets = [0, 64], sizes = [8, 32], strides = [1, 1]} : vector<8x128xf32> to vector<8x32xf32>
    %237 = vector.extract_strided_slice %232 {offsets = [0, 96], sizes = [8, 32], strides = [1, 1]} : vector<8x128xf32> to vector<8x32xf32>
    %238 = arith.mulf %235, %202 : vector<8x32xf32>
    %239 = arith.mulf %234, %236 : vector<8x32xf32>
    %240 = arith.addf %238, %239 : vector<8x32xf32>
    %241 = math.tanh %240 : vector<8x32xf32>
    %242 = arith.mulf %237, %241 : vector<8x32xf32>
    %243 = vector.extract_strided_slice %10 {offsets = [6, 0, 0], sizes = [1, 8, 128], strides = [1, 1, 1]} : vector<8x8x128xf32> to vector<1x8x128xf32>
    %244 = vector.shape_cast %243 : vector<1x8x128xf32> to vector<8x128xf32>
    %cst_38 = arith.constant dense<0.000000e+00> : vector<8x128xf32>
    %245 = tpu.matmul %223, %2, %cst_38 {dimension_numbers = #tpu.dot_dimension_numbers<[1], [0], [0], [1], [0, 0, 1, 1], [], []>} : vector<8x32xf32>, vector<32x128xf32>, vector<8x128xf32> -> vector<8x128xf32>
    %246 = arith.addf %244, %245 : vector<8x128xf32>
    %247 = arith.negf %246 : vector<8x128xf32>
    %248 = math.exp %247 : vector<8x128xf32>
    %cst_39 = arith.constant 1.000000e+00 : f32
    %249 = vector.broadcast %cst_39 : f32 to vector<8x128xf32>
    %250 = arith.addf %249, %248 : vector<8x128xf32>
    %251 = arith.divf %249, %250 : vector<8x128xf32>
    %252 = math.tanh %246 : vector<8x128xf32>
    %253 = vector.extract_strided_slice %251 {offsets = [0, 0], sizes = [8, 32], strides = [1, 1]} : vector<8x128xf32> to vector<8x32xf32>
    %254 = vector.extract_strided_slice %251 {offsets = [0, 32], sizes = [8, 32], strides = [1, 1]} : vector<8x128xf32> to vector<8x32xf32>
    %255 = vector.extract_strided_slice %252 {offsets = [0, 64], sizes = [8, 32], strides = [1, 1]} : vector<8x128xf32> to vector<8x32xf32>
    %256 = vector.extract_strided_slice %251 {offsets = [0, 96], sizes = [8, 32], strides = [1, 1]} : vector<8x128xf32> to vector<8x32xf32>
    %257 = arith.mulf %254, %221 : vector<8x32xf32>
    %258 = arith.mulf %253, %255 : vector<8x32xf32>
    %259 = arith.addf %257, %258 : vector<8x32xf32>
    %260 = math.tanh %259 : vector<8x32xf32>
    %261 = arith.mulf %256, %260 : vector<8x32xf32>
    %262 = tpu.concatenate %261, %242 in 1 : vector<8x32xf32>, vector<8x32xf32> -> vector<8x64xf32>
    %cst_40 = arith.constant dense<0.000000e+00> : vector<8x128xf32>
    %263 = tpu.matmul %262, %3, %cst_40 {dimension_numbers = #tpu.dot_dimension_numbers<[1], [0], [0], [1], [0, 0, 1, 1], [], []>} : vector<8x64xf32>, vector<64x128xf32>, vector<8x128xf32> -> vector<8x128xf32>
    %264 = vector.broadcast %5 : vector<1x128xf32> to vector<8x128xf32>
    %265 = arith.addf %263, %264 : vector<8x128xf32>
    %266 = arith.negf %265 : vector<8x128xf32>
    %267 = math.exp %266 : vector<8x128xf32>
    %cst_41 = arith.constant 1.000000e+00 : f32
    %268 = vector.broadcast %cst_41 : f32 to vector<8x128xf32>
    %269 = arith.addf %268, %267 : vector<8x128xf32>
    %270 = arith.divf %268, %269 : vector<8x128xf32>
    %271 = math.tanh %265 : vector<8x128xf32>
    %272 = vector.extract_strided_slice %270 {offsets = [0, 0], sizes = [8, 32], strides = [1, 1]} : vector<8x128xf32> to vector<8x32xf32>
    %273 = vector.extract_strided_slice %270 {offsets = [0, 32], sizes = [8, 32], strides = [1, 1]} : vector<8x128xf32> to vector<8x32xf32>
    %274 = vector.extract_strided_slice %271 {offsets = [0, 64], sizes = [8, 32], strides = [1, 1]} : vector<8x128xf32> to vector<8x32xf32>
    %275 = vector.extract_strided_slice %270 {offsets = [0, 96], sizes = [8, 32], strides = [1, 1]} : vector<8x128xf32> to vector<8x32xf32>
    %276 = arith.mulf %273, %240 : vector<8x32xf32>
    %277 = arith.mulf %272, %274 : vector<8x32xf32>
    %278 = arith.addf %276, %277 : vector<8x32xf32>
    %279 = math.tanh %278 : vector<8x32xf32>
    %280 = arith.mulf %275, %279 : vector<8x32xf32>
    %281 = vector.extract_strided_slice %10 {offsets = [7, 0, 0], sizes = [1, 8, 128], strides = [1, 1, 1]} : vector<8x8x128xf32> to vector<1x8x128xf32>
    %282 = vector.shape_cast %281 : vector<1x8x128xf32> to vector<8x128xf32>
    %cst_42 = arith.constant dense<0.000000e+00> : vector<8x128xf32>
    %283 = tpu.matmul %261, %2, %cst_42 {dimension_numbers = #tpu.dot_dimension_numbers<[1], [0], [0], [1], [0, 0, 1, 1], [], []>} : vector<8x32xf32>, vector<32x128xf32>, vector<8x128xf32> -> vector<8x128xf32>
    %284 = arith.addf %282, %283 : vector<8x128xf32>
    %285 = arith.negf %284 : vector<8x128xf32>
    %286 = math.exp %285 : vector<8x128xf32>
    %cst_43 = arith.constant 1.000000e+00 : f32
    %287 = vector.broadcast %cst_43 : f32 to vector<8x128xf32>
    %288 = arith.addf %287, %286 : vector<8x128xf32>
    %289 = arith.divf %287, %288 : vector<8x128xf32>
    %290 = math.tanh %284 : vector<8x128xf32>
    %291 = vector.extract_strided_slice %289 {offsets = [0, 0], sizes = [8, 32], strides = [1, 1]} : vector<8x128xf32> to vector<8x32xf32>
    %292 = vector.extract_strided_slice %289 {offsets = [0, 32], sizes = [8, 32], strides = [1, 1]} : vector<8x128xf32> to vector<8x32xf32>
    %293 = vector.extract_strided_slice %290 {offsets = [0, 64], sizes = [8, 32], strides = [1, 1]} : vector<8x128xf32> to vector<8x32xf32>
    %294 = vector.extract_strided_slice %289 {offsets = [0, 96], sizes = [8, 32], strides = [1, 1]} : vector<8x128xf32> to vector<8x32xf32>
    %295 = arith.mulf %292, %259 : vector<8x32xf32>
    %296 = arith.mulf %291, %293 : vector<8x32xf32>
    %297 = arith.addf %295, %296 : vector<8x32xf32>
    %298 = math.tanh %297 : vector<8x32xf32>
    %299 = arith.mulf %294, %298 : vector<8x32xf32>
    %300 = tpu.concatenate %299, %280 in 1 : vector<8x32xf32>, vector<8x32xf32> -> vector<8x64xf32>
    %cst_44 = arith.constant dense<0.000000e+00> : vector<8x128xf32>
    %301 = tpu.matmul %300, %3, %cst_44 {dimension_numbers = #tpu.dot_dimension_numbers<[1], [0], [0], [1], [0, 0, 1, 1], [], []>} : vector<8x64xf32>, vector<64x128xf32>, vector<8x128xf32> -> vector<8x128xf32>
    %302 = vector.broadcast %5 : vector<1x128xf32> to vector<8x128xf32>
    %303 = arith.addf %301, %302 : vector<8x128xf32>
    %304 = arith.negf %303 : vector<8x128xf32>
    %305 = math.exp %304 : vector<8x128xf32>
    %cst_45 = arith.constant 1.000000e+00 : f32
    %306 = vector.broadcast %cst_45 : f32 to vector<8x128xf32>
    %307 = arith.addf %306, %305 : vector<8x128xf32>
    %308 = arith.divf %306, %307 : vector<8x128xf32>
    %309 = math.tanh %303 : vector<8x128xf32>
    %310 = vector.extract_strided_slice %308 {offsets = [0, 0], sizes = [8, 32], strides = [1, 1]} : vector<8x128xf32> to vector<8x32xf32>
    %311 = vector.extract_strided_slice %308 {offsets = [0, 32], sizes = [8, 32], strides = [1, 1]} : vector<8x128xf32> to vector<8x32xf32>
    %312 = vector.extract_strided_slice %309 {offsets = [0, 64], sizes = [8, 32], strides = [1, 1]} : vector<8x128xf32> to vector<8x32xf32>
    %313 = vector.extract_strided_slice %308 {offsets = [0, 96], sizes = [8, 32], strides = [1, 1]} : vector<8x128xf32> to vector<8x32xf32>
    %314 = arith.mulf %311, %278 : vector<8x32xf32>
    %315 = arith.mulf %310, %312 : vector<8x32xf32>
    %316 = arith.addf %314, %315 : vector<8x32xf32>
    %317 = math.tanh %316 : vector<8x32xf32>
    %318 = arith.mulf %313, %317 : vector<8x32xf32>
    %319 = vector.shape_cast %52 : vector<8x32xf32> to vector<1x8x32xf32>
    %320 = vector.shape_cast %90 : vector<8x32xf32> to vector<1x8x32xf32>
    %321 = vector.shape_cast %128 : vector<8x32xf32> to vector<1x8x32xf32>
    %322 = vector.shape_cast %166 : vector<8x32xf32> to vector<1x8x32xf32>
    %323 = vector.shape_cast %204 : vector<8x32xf32> to vector<1x8x32xf32>
    %324 = vector.shape_cast %242 : vector<8x32xf32> to vector<1x8x32xf32>
    %325 = vector.shape_cast %280 : vector<8x32xf32> to vector<1x8x32xf32>
    %326 = vector.shape_cast %318 : vector<8x32xf32> to vector<1x8x32xf32>
    %327 = tpu.concatenate %319, %320, %321, %322, %323, %324, %325, %326 in 0 : vector<1x8x32xf32>, vector<1x8x32xf32>, vector<1x8x32xf32>, vector<1x8x32xf32>, vector<1x8x32xf32>, vector<1x8x32xf32>, vector<1x8x32xf32>, vector<1x8x32xf32> -> vector<8x8x32xf32>
    %328 = vector.shape_cast %327 : vector<8x8x32xf32> to vector<64x32xf32>
    %c0_46 = arith.constant 0 : index
    %c0_47 = arith.constant 0 : index
    %329 = vector.load %arg5[%c0_46, %c0_47] : memref<32x16xf32, #tpu.memory_space<vmem>>, vector<32x16xf32>
    %cst_48 = arith.constant dense<0.000000e+00> : vector<64x16xf32>
    %330 = tpu.matmul %328, %329, %cst_48 {dimension_numbers = #tpu.dot_dimension_numbers<[1], [0], [0], [1], [0, 0, 1, 1], [], []>} : vector<64x32xf32>, vector<32x16xf32>, vector<64x16xf32> -> vector<64x16xf32>
    %c0_49 = arith.constant 0 : index
    %c0_50 = arith.constant 0 : index
    %331 = vector.load %arg6[%c0_49, %c0_50] : memref<1x16xf32, #tpu.memory_space<vmem>>, vector<1x16xf32>
    %332 = vector.broadcast %331 : vector<1x16xf32> to vector<64x16xf32>
    %333 = arith.addf %330, %332 : vector<64x16xf32>
    %cst_51 = arith.constant 0.000000e+00 : f32
    %334 = vector.broadcast %cst_51 : f32 to vector<64x16xf32>
    %335 = arith.maximumf %333, %334 : vector<64x16xf32>
    %336 = vector.shape_cast %335 : vector<64x16xf32> to vector<8x8x16xf32>
    %c0_52 = arith.constant 0 : index
    %c0_53 = arith.constant 0 : index
    %337 = vector.load %arg7[%c0_52, %c0_53] : memref<1x16xf32, #tpu.memory_space<vmem>>, vector<1x16xf32>
    %338 = vector.shape_cast %337 : vector<1x16xf32> to vector<1x1x16xf32>
    %339 = vector.broadcast %338 : vector<1x1x16xf32> to vector<8x8x16xf32>
    %340 = arith.mulf %336, %339 : vector<8x8x16xf32>
    %cst_54 = arith.constant dense<0.000000e+00> : vector<8x8xf32>
    %341 = vector.multi_reduction <add>, %340, %cst_54 [2] : vector<8x8x16xf32> to vector<8x8xf32>
    %c0_55 = arith.constant 0 : index
    %c0_56 = arith.constant 0 : index
    %342 = vector.load %arg8[%c0_55, %c0_56] : memref<1x1xf32, #tpu.memory_space<vmem>>, vector<1x1xf32>
    %343 = vector.broadcast %342 : vector<1x1xf32> to vector<8x8xf32>
    %344 = arith.addf %341, %343 : vector<8x8xf32>
    %345 = arith.negf %344 : vector<8x8xf32>
    %346 = math.exp %345 : vector<8x8xf32>
    %cst_57 = arith.constant 1.000000e+00 : f32
    %347 = vector.broadcast %cst_57 : f32 to vector<8x8xf32>
    %348 = arith.addf %347, %346 : vector<8x8xf32>
    %349 = arith.divf %347, %348 : vector<8x8xf32>
    %c0_58 = arith.constant 0 : index
    %c0_59 = arith.constant 0 : index
    %350 = vector.load %arg9[%c0_58, %c0_59] : memref<8x8xf32, #tpu.memory_space<vmem>>, vector<8x8xf32>
    tpu.vector_store %arg9[%c0_58, %c0_59], %349 {strides = array<i32>} : memref<8x8xf32, #tpu.memory_space<vmem>>, vector<8x8xf32>,
    return
  }
  func.func @transform_0(%arg0: i32) -> (i32, i32, i32) {
    %c0_i32 = arith.constant 0 : i32
    %c0_i32_0 = arith.constant 0 : i32
    %c0_i32_1 = arith.constant 0 : i32
    return %c0_i32, %arg0, %c0_i32_0 : i32, i32, i32
  }
  func.func @transform_1(%arg0: i32) -> (i32, i32) {
    %c0_i32 = arith.constant 0 : i32
    %c0_i32_0 = arith.constant 0 : i32
    %c0_i32_1 = arith.constant 0 : i32
    return %c0_i32, %c0_i32_0 : i32, i32
  }
  func.func @transform_2(%arg0: i32) -> (i32, i32) {
    %c0_i32 = arith.constant 0 : i32
    %c0_i32_0 = arith.constant 0 : i32
    %c0_i32_1 = arith.constant 0 : i32
    return %c0_i32, %c0_i32_0 : i32, i32
  }
  func.func @transform_3(%arg0: i32) -> (i32, i32) {
    %c0_i32 = arith.constant 0 : i32
    %c0_i32_0 = arith.constant 0 : i32
    %c0_i32_1 = arith.constant 0 : i32
    return %c0_i32, %c0_i32_0 : i32, i32
  }
  func.func @transform_4(%arg0: i32) -> (i32, i32) {
    %c0_i32 = arith.constant 0 : i32
    %c0_i32_0 = arith.constant 0 : i32
    %c0_i32_1 = arith.constant 0 : i32
    return %c0_i32, %c0_i32_0 : i32, i32
  }
  func.func @transform_5(%arg0: i32) -> (i32, i32) {
    %c0_i32 = arith.constant 0 : i32
    %c0_i32_0 = arith.constant 0 : i32
    %c0_i32_1 = arith.constant 0 : i32
    return %c0_i32, %c0_i32_0 : i32, i32
  }
  func.func @transform_6(%arg0: i32) -> (i32, i32) {
    %c0_i32 = arith.constant 0 : i32
    %c0_i32_0 = arith.constant 0 : i32
    %c0_i32_1 = arith.constant 0 : i32
    return %c0_i32, %c0_i32_0 : i32, i32
  }
  func.func @transform_7(%arg0: i32) -> (i32, i32) {
    %c0_i32 = arith.constant 0 : i32
    %c0_i32_0 = arith.constant 0 : i32
    %c0_i32_1 = arith.constant 0 : i32
    return %c0_i32, %c0_i32_0 : i32, i32
  }
  func.func @transform_8(%arg0: i32) -> (i32, i32) {
    %c0_i32 = arith.constant 0 : i32
    %c0_i32_0 = arith.constant 0 : i32
    return %c0_i32, %arg0 : i32, i32
  }
}

</mosaic_0001>

<llo_original>
// kernel: domain_grammar_forward.1
$region0: #{domain_grammar_forward.1}
  #allocation0 [shape = 'u32[]', space=smem, size = 0x4, offset = 0x4, fixed_abs, tag = 'smem constant byte address 0x4 - core index']
  #allocation1 [shape = 'u32[144,128]{1,0:T(1,128)}', space=vmem, size = 0x12000, scoped, tag = 'internal scratch']
  #allocation2 [shape = 'f32[1,1]{1,0:T(1,128)S(1)}', space=vmem, size = 0x200, scoped, tag = 'scoped memory for domain_grammar_forward.1']
  %s0 = inlined_call_operand.vmem [shape: f32[8,8,4], index: 0, kind: input, shape index: {}]
  %s1 = inlined_call_operand.vmem [shape: f32[4,128], index: 1, kind: input, shape index: {}]
  %s2 = inlined_call_operand.vmem [shape: f32[96,128], index: 2, kind: input, shape index: {}]
  %s3 = inlined_call_operand.vmem [shape: f32[2,128], index: 3, kind: input, shape index: {}]
  %s4 = inlined_call_operand.vmem [shape: f32[32,16], index: 4, kind: input, shape index: {}]
  %s5 = inlined_call_operand.vmem [shape: f32[1,16], index: 5, kind: input, shape index: {}]
  %s6 = inlined_call_operand.vmem [shape: f32[1,16], index: 6, kind: input, shape index: {}]
  %s7 = inlined_call_operand.<no memory space> [shape: f32[1,1], index: 7, kind: input, shape index: {}]
  %s8 = inlined_call_operand.vmem [shape: f32[8,8], index: 8, kind: output, shape index: {}]
  %s9 = sld [smem:[#allocation0]]
  $region42: #{domain_grammar_forward.1} parent=0
    _
  %s11 = ssub.s32 1, %s9
  %s12 = scalar_select 0, %s11, %s9
  %v13 = vstv %s7
  %14 = vst [vmem:[#allocation2] sm:$0x1] %v13
  // Predicated region
  $region2: #{domain_grammar_forward.1} parent=0 // pred_check
    _
  $region3: #{domain_grammar_forward.1} parent=0 // pred_check_branch
    %16 = sbr.rel (0) target = $region5
  $region4: #{domain_grammar_forward.1} parent=0 // pred_region
    _
  $region5: #{domain_grammar_forward.1} parent=0 // pred_fallthru
    _
  // Predicated region
  $region6: #{domain_grammar_forward.1} parent=0 // pred_check
    _
  $region7: #{domain_grammar_forward.1} parent=0 // pred_check_branch
    %18 = sbr.rel (0) target = $region9
  $region8: #{domain_grammar_forward.1} parent=0 // pred_region
    _
  $region9: #{domain_grammar_forward.1} parent=0 // pred_fallthru
    _
  // Predicated region
  $region10: #{domain_grammar_forward.1} parent=0 // pred_check
    _
  $region11: #{domain_grammar_forward.1} parent=0 // pred_check_branch
    %20 = sbr.rel (0) target = $region13
  $region12: #{domain_grammar_forward.1} parent=0 // pred_region
    _
  $region13: #{domain_grammar_forward.1} parent=0 // pred_fallthru
    _
  // Predicated region
  $region14: #{domain_grammar_forward.1} parent=0 // pred_check
    _
  $region15: #{domain_grammar_forward.1} parent=0 // pred_check_branch
    %22 = sbr.rel (0) target = $region17
  $region16: #{domain_grammar_forward.1} parent=0 // pred_region
    _
  $region17: #{domain_grammar_forward.1} parent=0 // pred_fallthru
    _
  // Predicated region
  $region18: #{domain_grammar_forward.1} parent=0 // pred_check
    _
  $region19: #{domain_grammar_forward.1} parent=0 // pred_check_branch
    %24 = sbr.rel (0) target = $region21
  $region20: #{domain_grammar_forward.1} parent=0 // pred_region
    _
  $region21: #{domain_grammar_forward.1} parent=0 // pred_fallthru
    _
  // Predicated region
  $region22: #{domain_grammar_forward.1} parent=0 // pred_check
    _
  $region23: #{domain_grammar_forward.1} parent=0 // pred_check_branch
    %26 = sbr.rel (0) target = $region25
  $region24: #{domain_grammar_forward.1} parent=0 // pred_region
    _
  $region25: #{domain_grammar_forward.1} parent=0 // pred_fallthru
    _
  // Predicated region
  $region26: #{domain_grammar_forward.1} parent=0 // pred_check
    _
  $region27: #{domain_grammar_forward.1} parent=0 // pred_check_branch
    %28 = sbr.rel (0) target = $region29
  $region28: #{domain_grammar_forward.1} parent=0 // pred_region
    _
  $region29: #{domain_grammar_forward.1} parent=0 // pred_fallthru
    _
  // Predicated region
  $region30: #{domain_grammar_forward.1} parent=0 // pred_check
    _
  $region31: #{domain_grammar_forward.1} parent=0 // pred_check_branch
    %30 = sbr.rel (0) target = $region33
  $region32: #{domain_grammar_forward.1} parent=0 // pred_region
    _
  $region33: #{domain_grammar_forward.1} parent=0 // pred_fallthru
    _
  %v31 = vld [vmem:[%s0] sm:$0xff]
  %v32 = vld [vmem:[%s0 + $0x8] sm:$0xff]
  %v33 = vld [vmem:[%s0 + $0x10] sm:$0xff]
  %v34 = vld [vmem:[%s0 + $0x18] sm:$0xff]
  %v35 = vld [vmem:[%s0 + $0x20] sm:$0xff]
  %v36 = vld [vmem:[%s0 + $0x28] sm:$0xff]
  %v37 = vld [vmem:[%s0 + $0x30] sm:$0xff]
  %v38 = vld [vmem:[%s0 + $0x38] sm:$0xff]
  %v39 = vld [vmem:[%s1] sm:$0xf]
  %v40 = vld [vmem:[%s2] sm:$0xff]
  %v41 = vld [vmem:[%s2 + $0x8] sm:$0xff]
  %v42 = vld [vmem:[%s2 + $0x10] sm:$0xff]
  %v43 = vld [vmem:[%s2 + $0x18] sm:$0xff]
  %v44 = vld [vmem:[%s2 + $0x20] sm:$0xff]
  %v45 = vld [vmem:[%s2 + $0x28] sm:$0xff]
  %v46 = vld [vmem:[%s2 + $0x30] sm:$0xff]
  %v47 = vld [vmem:[%s2 + $0x38] sm:$0xff]
  %v48 = vld [vmem:[%s2 + $0x40] sm:$0xff]
  %v49 = vld [vmem:[%s2 + $0x48] sm:$0xff]
  %v50 = vld [vmem:[%s2 + $0x50] sm:$0xff]
  %v51 = vld [vmem:[%s2 + $0x58] sm:$0xff]
  %v52 = vld [vmem:[%s3] sm:$0x1]
  %v53 = vld [vmem:[%s3 + $0x1] sm:$0x1]
  %v54 = vlaneseq
  %v55 = vshrl.u32 %v54, 7
  %v56 = vsub.s32 0, %v55
  %v57 = vrot.slane %v52, %v56
  %vm58 = vcmask 31744
  %v60 = vsel %vm58, %v31, 0
  %v63 = vsel %vm58, %v32, 0
  %v66 = vsel %vm58, %v33, 0
  %v69 = vsel %vm58, %v34, 0
  %v72 = vsel %vm58, %v35, 0
  %v75 = vsel %vm58, %v36, 0
  %v78 = vsel %vm58, %v37, 0
  %v81 = vsel %vm58, %v38, 0
  %vm83 = vcmask 1043456
  %v85 = vsel %vm83, %v39, 0
  %87 = vmatprep.subr.mxu0 0.0
  %88 = vmatpush1.msra.mxu0 %v85
  %89 = vmatprep.subr.mxu0 0.0
  %90 = vmatpush1.msra.mxu0 0.0
  %91 = vmatprep.subr.mxu0 0.0
  %92 = vmatpush1.msra.mxu0 0.0
  %93 = vmatprep.subr.mxu0 0.0
  %94 = vmatpush1.msra.mxu0 0.0
  %95 = vmatprep.subr.mxu0 0.0
  %96 = vmatpush1.msra.mxu0 0.0
  %97 = vmatprep.subr.mxu0 0.0
  %98 = vmatpush1.msra.mxu0 0.0
  %99 = vmatprep.subr.mxu0 0.0
  %100 = vmatpush1.msra.mxu0 0.0
  %101 = vmatprep.subr.mxu0 0.0
  %102 = vmatpush1.msra.mxu0 0.0
  %103 = vmatprep.subr.mxu0 0.0
  %104 = vmatpush1.msra.mxu0 0.0
  %105 = vmatprep.subr.mxu0 0.0
  %106 = vmatpush1.msra.mxu0 0.0
  %107 = vmatprep.subr.mxu0 0.0
  %108 = vmatpush1.msra.mxu0 0.0
  %109 = vmatprep.subr.mxu0 0.0
  %110 = vmatpush1.msra.mxu0 0.0
  %111 = vmatprep.subr.mxu0 0.0
  %112 = vmatpush1.msra.mxu0 0.0
  %113 = vmatprep.subr.mxu0 0.0
  %114 = vmatpush1.msra.mxu0 0.0
  %115 = vmatprep.subr.mxu0 0.0
  %116 = vmatpush1.msra.mxu0 0.0
  %117 = vmatprep.subr.mxu0 0.0
  %118 = vmatpush1.msra.mxu0 0.0
  %119 = vmatprep.subr.mxu0 0.0
  %120 = vmatpush1.msra.mxu0 0.0
  %121 = vmatprep.subr.mxu0 0.0
  %122 = vmatpush1.msra.mxu0 0.0
  %123 = vmatprep.subr.mxu0 0.0
  %124 = vmatpush1.msra.mxu0 0.0
  %125 = vmatprep.subr.mxu0 0.0
  %126 = vmatpush1.msra.mxu0 0.0
  %127 = vmatprep.subr.mxu0 0.0
  %128 = vmatpush1.msra.mxu0 0.0
  %129 = vmatprep.subr.mxu0 0.0
  %130 = vmatpush1.msra.mxu0 0.0
  %131 = vmatprep.subr.mxu0 0.0
  %132 = vmatpush1.msra.mxu0 0.0
  %133 = vmatprep.subr.mxu0 0.0
  %134 = vmatpush1.msra.mxu0 0.0
  %135 = vmatprep.subr.mxu0 0.0
  %136 = vmatpush1.msra.mxu0 0.0
  %137 = vmatprep.subr.mxu0 0.0
  %138 = vmatpush1.msra.mxu0 0.0
  %139 = vmatprep.subr.mxu0 0.0
  %140 = vmatpush1.msra.mxu0 0.0
  %141 = vmatprep.subr.mxu0 0.0
  %142 = vmatpush1.msra.mxu0 0.0
  %143 = vmatprep.subr.mxu0 0.0
  %144 = vmatpush1.msra.mxu0 0.0
  %145 = vmatprep.subr.mxu0 0.0
  %146 = vmatpush1.msra.mxu0 0.0
  %147 = vmatprep.subr.mxu0 0.0
  %148 = vmatpush1.msra.mxu0 0.0
  %149 = vmatprep.subr.mxu0 0.0
  %150 = vmatpush1.msra.mxu0 0.0
  %151 = vmatprep.mubr.f32.mxu0 0.0
  %152 = vmatmul.mubr.f32.gmra.mrb[0].mxu0 %v60
  %v153 = vpop.f32.mrb[0].mxu0
  %v154 = vadd.f32 %v57, %v153
  %v155 = vpop.f32.mrb[0].mxu0
  %156 = vmatprep.mubr.f32.mxu0 0.0
  %157 = vmatmul.mubr.f32.gmra.mrb[0].mxu0 %v63
  %v158 = vpop.f32.mrb[0].mxu0
  %v159 = vadd.f32 %v57, %v158
  %v160 = vpop.f32.mrb[0].mxu0
  %161 = vmatprep.mubr.f32.mxu0 0.0
  %162 = vmatmul.mubr.f32.gmra.mrb[0].mxu0 %v66
  %v163 = vpop.f32.mrb[0].mxu0
  %v164 = vadd.f32 %v57, %v163
  %v165 = vpop.f32.mrb[0].mxu0
  %166 = vmatprep.mubr.f32.mxu0 0.0
  %167 = vmatmul.mubr.f32.gmra.mrb[0].mxu0 %v69
  %v168 = vpop.f32.mrb[0].mxu0
  %v169 = vadd.f32 %v57, %v168
  %v170 = vpop.f32.mrb[0].mxu0
  %171 = vmatprep.mubr.f32.mxu0 0.0
  %172 = vmatmul.mubr.f32.gmra.mrb[0].mxu0 %v72
  %v173 = vpop.f32.mrb[0].mxu0
  %v174 = vadd.f32 %v57, %v173
  %v175 = vpop.f32.mrb[0].mxu0
  %176 = vmatprep.mubr.f32.mxu0 0.0
  %177 = vmatmul.mubr.f32.gmra.mrb[0].mxu0 %v75
  %v178 = vpop.f32.mrb[0].mxu0
  %v179 = vadd.f32 %v57, %v178
  %v180 = vpop.f32.mrb[0].mxu0
  %181 = vmatprep.mubr.f32.mxu0 0.0
  %182 = vmatmul.mubr.f32.gmra.mrb[0].mxu0 %v78
  %v183 = vpop.f32.mrb[0].mxu0
  %v184 = vadd.f32 %v57, %v183
  %v185 = vpop.f32.mrb[0].mxu0
  %186 = vmatprep.mubr.f32.mxu0 0.0
  %187 = vmatmul.mubr.f32.gmra.mrb[0].mxu0 %v81
  %v188 = vpop.f32.mrb[0].mxu0
  %v189 = vadd.f32 %v57, %v188
  %v190 = vpop.f32.mrb[0].mxu0
  %191 = vdwg.mxu0
  %vm192 = vcmask 261120
  %v194 = vsel %vm192, 0.0, 0
  %196 = vmatprep.subr.mxu0 0.0
  %197 = vmatpush1.msra.mxu0 %v40
  %198 = vmatprep.subr.mxu0 0.0
  %199 = vmatpush1.msra.mxu0 %v41
  %200 = vmatprep.subr.mxu0 0.0
  %201 = vmatpush1.msra.mxu0 %v42
  %202 = vmatprep.subr.mxu0 0.0
  %203 = vmatpush1.msra.mxu0 %v43
  %204 = vmatprep.subr.mxu0 0.0
  %205 = vmatpush1.msra.mxu0 0.0
  %206 = vmatprep.subr.mxu0 0.0
  %207 = vmatpush1.msra.mxu0 0.0
  %208 = vmatprep.subr.mxu0 0.0
  %209 = vmatpush1.msra.mxu0 0.0
  %210 = vmatprep.subr.mxu0 0.0
  %211 = vmatpush1.msra.mxu0 0.0
  %212 = vmatprep.subr.mxu0 0.0
  %213 = vmatpush1.msra.mxu0 0.0
  %214 = vmatprep.subr.mxu0 0.0
  %215 = vmatpush1.msra.mxu0 0.0
  %216 = vmatprep.subr.mxu0 0.0
  %217 = vmatpush1.msra.mxu0 0.0
  %218 = vmatprep.subr.mxu0 0.0
  %219 = vmatpush1.msra.mxu0 0.0
  %220 = vmatprep.subr.mxu0 0.0
  %221 = vmatpush1.msra.mxu0 0.0
  %222 = vmatprep.subr.mxu0 0.0
  %223 = vmatpush1.msra.mxu0 0.0
  %224 = vmatprep.subr.mxu0 0.0
  %225 = vmatpush1.msra.mxu0 0.0
  %226 = vmatprep.subr.mxu0 0.0
  %227 = vmatpush1.msra.mxu0 0.0
  %228 = vmatprep.subr.mxu0 0.0
  %229 = vmatpush1.msra.mxu0 0.0
  %230 = vmatprep.subr.mxu0 0.0
  %231 = vmatpush1.msra.mxu0 0.0
  %232 = vmatprep.subr.mxu0 0.0
  %233 = vmatpush1.msra.mxu0 0.0
  %234 = vmatprep.subr.mxu0 0.0
  %235 = vmatpush1.msra.mxu0 0.0
  %236 = vmatprep.subr.mxu0 0.0
  %237 = vmatpush1.msra.mxu0 0.0
  %238 = vmatprep.subr.mxu0 0.0
  %239 = vmatpush1.msra.mxu0 0.0
  %240 = vmatprep.subr.mxu0 0.0
  %241 = vmatpush1.msra.mxu0 0.0
  %242 = vmatprep.subr.mxu0 0.0
  %243 = vmatpush1.msra.mxu0 0.0
  %244 = vmatprep.subr.mxu0 0.0
  %245 = vmatpush1.msra.mxu0 0.0
  %246 = vmatprep.subr.mxu0 0.0
  %247 = vmatpush1.msra.mxu0 0.0
  %248 = vmatprep.subr.mxu0 0.0
  %249 = vmatpush1.msra.mxu0 0.0
  %250 = vmatprep.subr.mxu0 0.0
  %251 = vmatpush1.msra.mxu0 0.0
  %252 = vmatprep.subr.mxu0 0.0
  %253 = vmatpush1.msra.mxu0 0.0
  %254 = vmatprep.subr.mxu0 0.0
  %255 = vmatpush1.msra.mxu0 0.0
  %256 = vmatprep.subr.mxu0 0.0
  %257 = vmatpush1.msra.mxu0 0.0
  %258 = vmatprep.subr.mxu0 0.0
  %259 = vmatpush1.msra.mxu0 0.0
  %260 = vmatprep.mubr.f32.mxu0 0.0
  %261 = vmatmul.mubr.f32.gmra.mrb[0].mxu0 %v194
  %v262 = vpop.f32.mrb[0].mxu0
  %v263 = vadd.f32 0.0, %v262
  %v264 = vpop.f32.mrb[0].mxu0
  %265 = vdwg.mxu0
  %v266 = vadd.f32 %v154, %v263
  %v267 = vxor.u32 %v266, 2147483648
  %v268 = vmul.f32 %v267, 1.442695
  %v269 = vpow.pop %v268
  %v270 = vadd.f32 %v269, 1.0
  %v271 = vrcp.pop %v270
  %v272 = vmul.f32 1.0, %v271
  %v273 = vtanh.pop %v266
  %v274 = vmul.f32 %v272, 0.0
  %276 = vrot.lane.b32.xlu0 %v273, 64
  %v277 = vpop.permute.xlu0 %276
  %v279 = vmul.f32 %v272, %v277
  %281 = vrot.lane.b32.xlu0 %v279, 32
  %v282 = vpop.permute.xlu0 %281
  %v284 = vadd.f32 %v274, %v282
  %v285 = vtanh.pop %v284
  %287 = vrot.lane.b32.xlu0 %v285, 64
  %v288 = vpop.permute.xlu0 %287
  %v290 = vmul.f32 %v272, %v288
  %292 = vrot.lane.b32.xlu0 %v290, 32
  %v293 = vpop.permute.xlu0 %292
  %v295 = vsel %vm192, %v293, 0.0
  %v296 = vlaneseq
  %v297 = vshrl.u32 %v296, 7
  %v298 = vsub.s32 0, %v297
  %v299 = vrot.slane %v53, %v298
  %vm300 = vcmask 523264
  %v302 = vsel %vm300, %v295, 0
  %304 = vmatprep.subr.mxu0 0.0
  %305 = vmatpush1.msra.mxu0 %v44
  %306 = vmatprep.subr.mxu0 0.0
  %307 = vmatpush1.msra.mxu0 %v45
  %308 = vmatprep.subr.mxu0 0.0
  %309 = vmatpush1.msra.mxu0 %v46
  %310 = vmatprep.subr.mxu0 0.0
  %311 = vmatpush1.msra.mxu0 %v47
  %312 = vmatprep.subr.mxu0 0.0
  %313 = vmatpush1.msra.mxu0 %v48
  %314 = vmatprep.subr.mxu0 0.0
  %315 = vmatpush1.msra.mxu0 %v49
  %316 = vmatprep.subr.mxu0 0.0
  %317 = vmatpush1.msra.mxu0 %v50
  %318 = vmatprep.subr.mxu0 0.0
  %319 = vmatpush1.msra.mxu0 %v51
  %320 = vmatprep.subr.mxu0 0.0
  %321 = vmatpush1.msra.mxu0 0.0
  %322 = vmatprep.subr.mxu0 0.0
  %323 = vmatpush1.msra.mxu0 0.0
  %324 = vmatprep.subr.mxu0 0.0
  %325 = vmatpush1.msra.mxu0 0.0
  %326 = vmatprep.subr.mxu0 0.0
  %327 = vmatpush1.msra.mxu0 0.0
  %328 = vmatprep.subr.mxu0 0.0
  %329 = vmatpush1.msra.mxu0 0.0
  %330 = vmatprep.subr.mxu0 0.0
  %331 = vmatpush1.msra.mxu0 0.0
  %332 = vmatprep.subr.mxu0 0.0
  %333 = vmatpush1.msra.mxu0 0.0
  %334 = vmatprep.subr.mxu0 0.0
  %335 = vmatpush1.msra.mxu0 0.0
  %336 = vmatprep.subr.mxu0 0.0
  %337 = vmatpush1.msra.mxu0 0.0
  %338 = vmatprep.subr.mxu0 0.0
  %339 = vmatpush1.msra.mxu0 0.0
  %340 = vmatprep.subr.mxu0 0.0
  %341 = vmatpush1.msra.mxu0 0.0
  %342 = vmatprep.subr.mxu0 0.0
  %343 = vmatpush1.msra.mxu0 0.0
  %344 = vmatprep.subr.mxu0 0.0
  %345 = vmatpush1.msra.mxu0 0.0
  %346 = vmatprep.subr.mxu0 0.0
  %347 = vmatpush1.msra.mxu0 0.0
  %348 = vmatprep.subr.mxu0 0.0
  %349 = vmatpush1.msra.mxu0 0.0
  %350 = vmatprep.subr.mxu0 0.0
  %351 = vmatpush1.msra.mxu0 0.0
  %352 = vmatprep.subr.mxu0 0.0
  %353 = vmatpush1.msra.mxu0 0.0
  %354 = vmatprep.subr.mxu0 0.0
  %355 = vmatpush1.msra.mxu0 0.0
  %356 = vmatprep.subr.mxu0 0.0
  %357 = vmatpush1.msra.mxu0 0.0
  %358 = vmatprep.subr.mxu0 0.0
  %359 = vmatpush1.msra.mxu0 0.0
  %360 = vmatprep.subr.mxu0 0.0
  %361 = vmatpush1.msra.mxu0 0.0
  %362 = vmatprep.subr.mxu0 0.0
  %363 = vmatpush1.msra.mxu0 0.0
  %364 = vmatprep.subr.mxu0 0.0
  %365 = vmatpush1.msra.mxu0 0.0
  %366 = vmatprep.subr.mxu0 0.0
  %367 = vmatpush1.msra.mxu0 0.0
  %368 = vmatprep.mubr.f32.mxu0 0.0
  %369 = vmatmul.mubr.f32.gmra.mrb[0].mxu0 %v302
  %v370 = vpop.f32.mrb[0].mxu0
  %v371 = vadd.f32 %v299, %v370
  %v372 = vpop.f32.mrb[0].mxu0
  %373 = vdwg.mxu0
  %v374 = vxor.u32 %v371, 2147483648
  %v375 = vmul.f32 %v374, 1.442695
  %v376 = vpow.pop %v375
  %v377 = vadd.f32 %v376, 1.0
  %v378 = vrcp.pop %v377
  %v379 = vmul.f32 1.0, %v378
  %v380 = vtanh.pop %v371
  %v381 = vmul.f32 %v379, 0.0
  %383 = vrot.lane.b32.xlu0 %v380, 64
  %v384 = vpop.permute.xlu0 %383
  %v386 = vmul.f32 %v379, %v384
  %388 = vrot.lane.b32.xlu0 %v386, 32
  %v389 = vpop.permute.xlu0 %388
  %v391 = vadd.f32 %v381, %v389
  %v392 = vtanh.pop %v391
  %394 = vrot.lane.b32.xlu0 %v392, 64
  %v395 = vpop.permute.xlu0 %394
  %v397 = vmul.f32 %v379, %v395
  %v398 = vsel %vm192, %v293, 0
  %400 = vmatprep.subr.mxu0 0.0
  %401 = vmatpush1.msra.mxu0 %v40
  %402 = vmatprep.subr.mxu0 0.0
  %403 = vmatpush1.msra.mxu0 %v41
  %404 = vmatprep.subr.mxu0 0.0
  %405 = vmatpush1.msra.mxu0 %v42
  %406 = vmatprep.subr.mxu0 0.0
  %407 = vmatpush1.msra.mxu0 %v43
  %408 = vmatprep.subr.mxu0 0.0
  %409 = vmatpush1.msra.mxu0 0.0
  %410 = vmatprep.subr.mxu0 0.0
  %411 = vmatpush1.msra.mxu0 0.0
  %412 = vmatprep.subr.mxu0 0.0
  %413 = vmatpush1.msra.mxu0 0.0
  %414 = vmatprep.subr.mxu0 0.0
  %415 = vmatpush1.msra.mxu0 0.0
  %416 = vmatprep.subr.mxu0 0.0
  %417 = vmatpush1.msra.mxu0 0.0
  %418 = vmatprep.subr.mxu0 0.0
  %419 = vmatpush1.msra.mxu0 0.0
  %420 = vmatprep.subr.mxu0 0.0
  %421 = vmatpush1.msra.mxu0 0.0
  %422 = vmatprep.subr.mxu0 0.0
  %423 = vmatpush1.msra.mxu0 0.0
  %424 = vmatprep.subr.mxu0 0.0
  %425 = vmatpush1.msra.mxu0 0.0
  %426 = vmatprep.subr.mxu0 0.0
  %427 = vmatpush1.msra.mxu0 0.0
  %428 = vmatprep.subr.mxu0 0.0
  %429 = vmatpush1.msra.mxu0 0.0
  %430 = vmatprep.subr.mxu0 0.0
  %431 = vmatpush1.msra.mxu0 0.0
  %432 = vmatprep.subr.mxu0 0.0
  %433 = vmatpush1.msra.mxu0 0.0
  %434 = vmatprep.subr.mxu0 0.0
  %435 = vmatpush1.msra.mxu0 0.0
  %436 = vmatprep.subr.mxu0 0.0
  %437 = vmatpush1.msra.mxu0 0.0
  %438 = vmatprep.subr.mxu0 0.0
  %439 = vmatpush1.msra.mxu0 0.0
  %440 = vmatprep.subr.mxu0 0.0
  %441 = vmatpush1.msra.mxu0 0.0
  %442 = vmatprep.subr.mxu0 0.0
  %443 = vmatpush1.msra.mxu0 0.0
  %444 = vmatprep.subr.mxu0 0.0
  %445 = vmatpush1.msra.mxu0 0.0
  %446 = vmatprep.subr.mxu0 0.0
  %447 = vmatpush1.msra.mxu0 0.0
  %448 = vmatprep.subr.mxu0 0.0
  %449 = vmatpush1.msra.mxu0 0.0
  %450 = vmatprep.subr.mxu0 0.0
  %451 = vmatpush1.msra.mxu0 0.0
  %452 = vmatprep.subr.mxu0 0.0
  %453 = vmatpush1.msra.mxu0 0.0
  %454 = vmatprep.subr.mxu0 0.0
  %455 = vmatpush1.msra.mxu0 0.0
  %456 = vmatprep.subr.mxu0 0.0
  %457 = vmatpush1.msra.mxu0 0.0
  %458 = vmatprep.subr.mxu0 0.0
  %459 = vmatpush1.msra.mxu0 0.0
  %460 = vmatprep.subr.mxu0 0.0
  %461 = vmatpush1.msra.mxu0 0.0
  %462 = vmatprep.subr.mxu0 0.0
  %463 = vmatpush1.msra.mxu0 0.0
  %464 = vmatprep.mubr.f32.mxu0 0.0
  %465 = vmatmul.mubr.f32.gmra.mrb[0].mxu0 %v398
  %v466 = vpop.f32.mrb[0].mxu0
  %v467 = vadd.f32 0.0, %v466
  %v468 = vpop.f32.mrb[0].mxu0
  %469 = vdwg.mxu0
  %v470 = vadd.f32 %v159, %v467
  %v471 = vxor.u32 %v470, 2147483648
  %v472 = vmul.f32 %v471, 1.442695
  %v473 = vpow.pop %v472
  %v474 = vadd.f32 %v473, 1.0
  %v475 = vrcp.pop %v474
  %v476 = vmul.f32 1.0, %v475
  %v477 = vtanh.pop %v470
  %v478 = vmul.f32 %v476, %v284
  %480 = vrot.lane.b32.xlu0 %v477, 64
  %v481 = vpop.permute.xlu0 %480
  %v483 = vmul.f32 %v476, %v481
  %485 = vrot.lane.b32.xlu0 %v483, 32
  %v486 = vpop.permute.xlu0 %485
  %v488 = vadd.f32 %v478, %v486
  %v489 = vtanh.pop %v488
  %491 = vrot.lane.b32.xlu0 %v489, 64
  %v492 = vpop.permute.xlu0 %491
  %v494 = vmul.f32 %v476, %v492
  %496 = vrot.lane.b32.xlu0 %v494, 32
  %v497 = vpop.permute.xlu0 %496
  %500 = vrot.lane.b32.xlu0 %v397, 64
  %v501 = vpop.permute.xlu0 %500
  %v503 = vsel %vm192, %v497, %v501
  %v505 = vsel %vm300, %v503, 0
  %507 = vmatprep.subr.mxu0 0.0
  %508 = vmatpush1.msra.mxu0 %v44
  %509 = vmatprep.subr.mxu0 0.0
  %510 = vmatpush1.msra.mxu0 %v45
  %511 = vmatprep.subr.mxu0 0.0
  %512 = vmatpush1.msra.mxu0 %v46
  %513 = vmatprep.subr.mxu0 0.0
  %514 = vmatpush1.msra.mxu0 %v47
  %515 = vmatprep.subr.mxu0 0.0
  %516 = vmatpush1.msra.mxu0 %v48
  %517 = vmatprep.subr.mxu0 0.0
  %518 = vmatpush1.msra.mxu0 %v49
  %519 = vmatprep.subr.mxu0 0.0
  %520 = vmatpush1.msra.mxu0 %v50
  %521 = vmatprep.subr.mxu0 0.0
  %522 = vmatpush1.msra.mxu0 %v51
  %523 = vmatprep.subr.mxu0 0.0
  %524 = vmatpush1.msra.mxu0 0.0
  %525 = vmatprep.subr.mxu0 0.0
  %526 = vmatpush1.msra.mxu0 0.0
  %527 = vmatprep.subr.mxu0 0.0
  %528 = vmatpush1.msra.mxu0 0.0
  %529 = vmatprep.subr.mxu0 0.0
  %530 = vmatpush1.msra.mxu0 0.0
  %531 = vmatprep.subr.mxu0 0.0
  %532 = vmatpush1.msra.mxu0 0.0
  %533 = vmatprep.subr.mxu0 0.0
  %534 = vmatpush1.msra.mxu0 0.0
  %535 = vmatprep.subr.mxu0 0.0
  %536 = vmatpush1.msra.mxu0 0.0
  %537 = vmatprep.subr.mxu0 0.0
  %538 = vmatpush1.msra.mxu0 0.0
  %539 = vmatprep.subr.mxu0 0.0
  %540 = vmatpush1.msra.mxu0 0.0
  %541 = vmatprep.subr.mxu0 0.0
  %542 = vmatpush1.msra.mxu0 0.0
  %543 = vmatprep.subr.mxu0 0.0
  %544 = vmatpush1.msra.mxu0 0.0
  %545 = vmatprep.subr.mxu0 0.0
  %546 = vmatpush1.msra.mxu0 0.0
  %547 = vmatprep.subr.mxu0 0.0
  %548 = vmatpush1.msra.mxu0 0.0
  %549 = vmatprep.subr.mxu0 0.0
  %550 = vmatpush1.msra.mxu0 0.0
  %551 = vmatprep.subr.mxu0 0.0
  %552 = vmatpush1.msra.mxu0 0.0
  %553 = vmatprep.subr.mxu0 0.0
  %554 = vmatpush1.msra.mxu0 0.0
  %555 = vmatprep.subr.mxu0 0.0
  %556 = vmatpush1.msra.mxu0 0.0
  %557 = vmatprep.subr.mxu0 0.0
  %558 = vmatpush1.msra.mxu0 0.0
  %559 = vmatprep.subr.mxu0 0.0
  %560 = vmatpush1.msra.mxu0 0.0
  %561 = vmatprep.subr.mxu0 0.0
  %562 = vmatpush1.msra.mxu0 0.0
  %563 = vmatprep.subr.mxu0 0.0
  %564 = vmatpush1.msra.mxu0 0.0
  %565 = vmatprep.subr.mxu0 0.0
  %566 = vmatpush1.msra.mxu0 0.0
  %567 = vmatprep.subr.mxu0 0.0
  %568 = vmatpush1.msra.mxu0 0.0
  %569 = vmatprep.subr.mxu0 0.0
  %570 = vmatpush1.msra.mxu0 0.0
  %571 = vmatprep.mubr.f32.mxu0 0.0
  %572 = vmatmul.mubr.f32.gmra.mrb[0].mxu0 %v505
  %v573 = vpop.f32.mrb[0].mxu0
  %v574 = vadd.f32 %v299, %v573
  %v575 = vpop.f32.mrb[0].mxu0
  %576 = vdwg.mxu0
  %v577 = vxor.u32 %v574, 2147483648
  %v578 = vmul.f32 %v577, 1.442695
  %v579 = vpow.pop %v578
  %v580 = vadd.f32 %v579, 1.0
  %v581 = vrcp.pop %v580
  %v582 = vmul.f32 1.0, %v581
  %v583 = vtanh.pop %v574
  %v584 = vmul.f32 %v582, %v391
  %586 = vrot.lane.b32.xlu0 %v583, 64
  %v587 = vpop.permute.xlu0 %586
  %v589 = vmul.f32 %v582, %v587
  %591 = vrot.lane.b32.xlu0 %v589, 32
  %v592 = vpop.permute.xlu0 %591
  %v594 = vadd.f32 %v584, %v592
  %v595 = vtanh.pop %v594
  %597 = vrot.lane.b32.xlu0 %v595, 64
  %v598 = vpop.permute.xlu0 %597
  %v600 = vmul.f32 %v582, %v598
  %v601 = vsel %vm192, %v497, 0
  %603 = vmatprep.subr.mxu0 0.0
  %604 = vmatpush1.msra.mxu0 %v40
  %605 = vmatprep.subr.mxu0 0.0
  %606 = vmatpush1.msra.mxu0 %v41
  %607 = vmatprep.subr.mxu0 0.0
  %608 = vmatpush1.msra.mxu0 %v42
  %609 = vmatprep.subr.mxu0 0.0
  %610 = vmatpush1.msra.mxu0 %v43
  %611 = vmatprep.subr.mxu0 0.0
  %612 = vmatpush1.msra.mxu0 0.0
  %613 = vmatprep.subr.mxu0 0.0
  %614 = vmatpush1.msra.mxu0 0.0
  %615 = vmatprep.subr.mxu0 0.0
  %616 = vmatpush1.msra.mxu0 0.0
  %617 = vmatprep.subr.mxu0 0.0
  %618 = vmatpush1.msra.mxu0 0.0
  %619 = vmatprep.subr.mxu0 0.0
  %620 = vmatpush1.msra.mxu0 0.0
  %621 = vmatprep.subr.mxu0 0.0
  %622 = vmatpush1.msra.mxu0 0.0
  %623 = vmatprep.subr.mxu0 0.0
  %624 = vmatpush1.msra.mxu0 0.0
  %625 = vmatprep.subr.mxu0 0.0
  %626 = vmatpush1.msra.mxu0 0.0
  %627 = vmatprep.subr.mxu0 0.0
  %628 = vmatpush1.msra.mxu0 0.0
  %629 = vmatprep.subr.mxu0 0.0
  %630 = vmatpush1.msra.mxu0 0.0
  %631 = vmatprep.subr.mxu0 0.0
  %632 = vmatpush1.msra.mxu0 0.0
  %633 = vmatprep.subr.mxu0 0.0
  %634 = vmatpush1.msra.mxu0 0.0
  %635 = vmatprep.subr.mxu0 0.0
  %636 = vmatpush1.msra.mxu0 0.0
  %637 = vmatprep.subr.mxu0 0.0
  %638 = vmatpush1.msra.mxu0 0.0
  %639 = vmatprep.subr.mxu0 0.0
  %640 = vmatpush1.msra.mxu0 0.0
  %641 = vmatprep.subr.mxu0 0.0
  %642 = vmatpush1.msra.mxu0 0.0
  %643 = vmatprep.subr.mxu0 0.0
  %644 = vmatpush1.msra.mxu0 0.0
  %645 = vmatprep.subr.mxu0 0.0
  %646 = vmatpush1.msra.mxu0 0.0
  %647 = vmatprep.subr.mxu0 0.0
  %648 = vmatpush1.msra.mxu0 0.0
  %649 = vmatprep.subr.mxu0 0.0
  %650 = vmatpush1.msra.mxu0 0.0
  %651 = vmatprep.subr.mxu0 0.0
  %652 = vmatpush1.msra.mxu0 0.0
  %653 = vmatprep.subr.mxu0 0.0
  %654 = vmatpush1.msra.mxu0 0.0
  %655 = vmatprep.subr.mxu0 0.0
  %656 = vmatpush1.msra.mxu0 0.0
  %657 = vmatprep.subr.mxu0 0.0
  %658 = vmatpush1.msra.mxu0 0.0
  %659 = vmatprep.subr.mxu0 0.0
  %660 = vmatpush1.msra.mxu0 0.0
  %661 = vmatprep.subr.mxu0 0.0
  %662 = vmatpush1.msra.mxu0 0.0
  %663 = vmatprep.subr.mxu0 0.0
  %664 = vmatpush1.msra.mxu0 0.0
  %665 = vmatprep.subr.mxu0 0.0
  %666 = vmatpush1.msra.mxu0 0.0
  %667 = vmatprep.mubr.f32.mxu0 0.0
  %668 = vmatmul.mubr.f32.gmra.mrb[0].mxu0 %v601
  %v669 = vpop.f32.mrb[0].mxu0
  %v670 = vadd.f32 0.0, %v669
  %v671 = vpop.f32.mrb[0].mxu0
  %672 = vdwg.mxu0
  %v673 = vadd.f32 %v164, %v670
  %v674 = vxor.u32 %v673, 2147483648
  %v675 = vmul.f32 %v674, 1.442695
  %v676 = vpow.pop %v675
  %v677 = vadd.f32 %v676, 1.0
  %v678 = vrcp.pop %v677
  %v679 = vmul.f32 1.0, %v678
  %v680 = vtanh.pop %v673
  %v681 = vmul.f32 %v679, %v488
  %683 = vrot.lane.b32.xlu0 %v680, 64
  %v684 = vpop.permute.xlu0 %683
  %v686 = vmul.f32 %v679, %v684
  %688 = vrot.lane.b32.xlu0 %v686, 32
  %v689 = vpop.permute.xlu0 %688
  %v691 = vadd.f32 %v681, %v689
  %v692 = vtanh.pop %v691
  %694 = vrot.lane.b32.xlu0 %v692, 64
  %v695 = vpop.permute.xlu0 %694
  %v697 = vmul.f32 %v679, %v695
  %699 = vrot.lane.b32.xlu0 %v697, 32
  %v700 = vpop.permute.xlu0 %699
  %703 = vrot.lane.b32.xlu0 %v600, 64
  %v704 = vpop.permute.xlu0 %703
  %v706 = vsel %vm192, %v700, %v704
  %v708 = vsel %vm300, %v706, 0
  %710 = vmatprep.subr.mxu0 0.0
  %711 = vmatpush1.msra.mxu0 %v44
  %712 = vmatprep.subr.mxu0 0.0
  %713 = vmatpush1.msra.mxu0 %v45
  %714 = vmatprep.subr.mxu0 0.0
  %715 = vmatpush1.msra.mxu0 %v46
  %716 = vmatprep.subr.mxu0 0.0
  %717 = vmatpush1.msra.mxu0 %v47
  %718 = vmatprep.subr.mxu0 0.0
  %719 = vmatpush1.msra.mxu0 %v48
  %720 = vmatprep.subr.mxu0 0.0
  %721 = vmatpush1.msra.mxu0 %v49
  %722 = vmatprep.subr.mxu0 0.0
  %723 = vmatpush1.msra.mxu0 %v50
  %724 = vmatprep.subr.mxu0 0.0
  %725 = vmatpush1.msra.mxu0 %v51
  %726 = vmatprep.subr.mxu0 0.0
  %727 = vmatpush1.msra.mxu0 0.0
  %728 = vmatprep.subr.mxu0 0.0
  %729 = vmatpush1.msra.mxu0 0.0
  %730 = vmatprep.subr.mxu0 0.0
  %731 = vmatpush1.msra.mxu0 0.0
  %732 = vmatprep.subr.mxu0 0.0
  %733 = vmatpush1.msra.mxu0 0.0
  %734 = vmatprep.subr.mxu0 0.0
  %735 = vmatpush1.msra.mxu0 0.0
  %736 = vmatprep.subr.mxu0 0.0
  %737 = vmatpush1.msra.mxu0 0.0
  %738 = vmatprep.subr.mxu0 0.0
  %739 = vmatpush1.msra.mxu0 0.0
  %740 = vmatprep.subr.mxu0 0.0
  %741 = vmatpush1.msra.mxu0 0.0
  %742 = vmatprep.subr.mxu0 0.0
  %743 = vmatpush1.msra.mxu0 0.0
  %744 = vmatprep.subr.mxu0 0.0
  %745 = vmatpush1.msra.mxu0 0.0
  %746 = vmatprep.subr.mxu0 0.0
  %747 = vmatpush1.msra.mxu0 0.0
  %748 = vmatprep.subr.mxu0 0.0
  %749 = vmatpush1.msra.mxu0 0.0
  %750 = vmatprep.subr.mxu0 0.0
  %751 = vmatpush1.msra.mxu0 0.0
  %752 = vmatprep.subr.mxu0 0.0
  %753 = vmatpush1.msra.mxu0 0.0
  %754 = vmatprep.subr.mxu0 0.0
  %755 = vmatpush1.msra.mxu0 0.0
  %756 = vmatprep.subr.mxu0 0.0
  %757 = vmatpush1.msra.mxu0 0.0
  %758 = vmatprep.subr.mxu0 0.0
  %759 = vmatpush1.msra.mxu0 0.0
  %760 = vmatprep.subr.mxu0 0.0
  %761 = vmatpush1.msra.mxu0 0.0
  %762 = vmatprep.subr.mxu0 0.0
  %763 = vmatpush1.msra.mxu0 0.0
  %764 = vmatprep.subr.mxu0 0.0
  %765 = vmatpush1.msra.mxu0 0.0
  %766 = vmatprep.subr.mxu0 0.0
  %767 = vmatpush1.msra.mxu0 0.0
  %768 = vmatprep.subr.mxu0 0.0
  %769 = vmatpush1.msra.mxu0 0.0
  %770 = vmatprep.subr.mxu0 0.0
  %771 = vmatpush1.msra.mxu0 0.0
  %772 = vmatprep.subr.mxu0 0.0
  %773 = vmatpush1.msra.mxu0 0.0
  %774 = vmatprep.mubr.f32.mxu0 0.0
  %775 = vmatmul.mubr.f32.gmra.mrb[0].mxu0 %v708
  %v776 = vpop.f32.mrb[0].mxu0
  %v777 = vadd.f32 %v299, %v776
  %v778 = vpop.f32.mrb[0].mxu0
  %779 = vdwg.mxu0
  %v780 = vxor.u32 %v777, 2147483648
  %v781 = vmul.f32 %v780, 1.442695
  %v782 = vpow.pop %v781
  %v783 = vadd.f32 %v782, 1.0
  %v784 = vrcp.pop %v783
  %v785 = vmul.f32 1.0, %v784
  %v786 = vtanh.pop %v777
  %v787 = vmul.f32 %v785, %v594
  %789 = vrot.lane.b32.xlu0 %v786, 64
  %v790 = vpop.permute.xlu0 %789
  %v792 = vmul.f32 %v785, %v790
  %794 = vrot.lane.b32.xlu0 %v792, 32
  %v795 = vpop.permute.xlu0 %794
  %v797 = vadd.f32 %v787, %v795
  %v798 = vtanh.pop %v797
  %800 = vrot.lane.b32.xlu0 %v798, 64
  %v801 = vpop.permute.xlu0 %800
  %v803 = vmul.f32 %v785, %v801
  %v804 = vsel %vm192, %v700, 0
  %806 = vmatprep.subr.mxu0 0.0
  %807 = vmatpush1.msra.mxu0 %v40
  %808 = vmatprep.subr.mxu0 0.0
  %809 = vmatpush1.msra.mxu0 %v41
  %810 = vmatprep.subr.mxu0 0.0
  %811 = vmatpush1.msra.mxu0 %v42
  %812 = vmatprep.subr.mxu0 0.0
  %813 = vmatpush1.msra.mxu0 %v43
  %814 = vmatprep.subr.mxu0 0.0
  %815 = vmatpush1.msra.mxu0 0.0
  %816 = vmatprep.subr.mxu0 0.0
  %817 = vmatpush1.msra.mxu0 0.0
  %818 = vmatprep.subr.mxu0 0.0
  %819 = vmatpush1.msra.mxu0 0.0
  %820 = vmatprep.subr.mxu0 0.0
  %821 = vmatpush1.msra.mxu0 0.0
  %822 = vmatprep.subr.mxu0 0.0
  %823 = vmatpush1.msra.mxu0 0.0
  %824 = vmatprep.subr.mxu0 0.0
  %825 = vmatpush1.msra.mxu0 0.0
  %826 = vmatprep.subr.mxu0 0.0
  %827 = vmatpush1.msra.mxu0 0.0
  %828 = vmatprep.subr.mxu0 0.0
  %829 = vmatpush1.msra.mxu0 0.0
  %830 = vmatprep.subr.mxu0 0.0
  %831 = vmatpush1.msra.mxu0 0.0
  %832 = vmatprep.subr.mxu0 0.0
  %833 = vmatpush1.msra.mxu0 0.0
  %834 = vmatprep.subr.mxu0 0.0
  %835 = vmatpush1.msra.mxu0 0.0
  %836 = vmatprep.subr.mxu0 0.0
  %837 = vmatpush1.msra.mxu0 0.0
  %838 = vmatprep.subr.mxu0 0.0
  %839 = vmatpush1.msra.mxu0 0.0
  %840 = vmatprep.subr.mxu0 0.0
  %841 = vmatpush1.msra.mxu0 0.0
  %842 = vmatprep.subr.mxu0 0.0
  %843 = vmatpush1.msra.mxu0 0.0
  %844 = vmatprep.subr.mxu0 0.0
  %845 = vmatpush1.msra.mxu0 0.0
  %846 = vmatprep.subr.mxu0 0.0
  %847 = vmatpush1.msra.mxu0 0.0
  %848 = vmatprep.subr.mxu0 0.0
  %849 = vmatpush1.msra.mxu0 0.0
  %850 = vmatprep.subr.mxu0 0.0
  %851 = vmatpush1.msra.mxu0 0.0
  %852 = vmatprep.subr.mxu0 0.0
  %853 = vmatpush1.msra.mxu0 0.0
  %854 = vmatprep.subr.mxu0 0.0
  %855 = vmatpush1.msra.mxu0 0.0
  %856 = vmatprep.subr.mxu0 0.0
  %857 = vmatpush1.msra.mxu0 0.0
  %858 = vmatprep.subr.mxu0 0.0
  %859 = vmatpush1.msra.mxu0 0.0
  %860 = vmatprep.subr.mxu0 0.0
  %861 = vmatpush1.msra.mxu0 0.0
  %862 = vmatprep.subr.mxu0 0.0
  %863 = vmatpush1.msra.mxu0 0.0
  %864 = vmatprep.subr.mxu0 0.0
  %865 = vmatpush1.msra.mxu0 0.0
  %866 = vmatprep.subr.mxu0 0.0
  %867 = vmatpush1.msra.mxu0 0.0
  %868 = vmatprep.subr.mxu0 0.0
  %869 = vmatpush1.msra.mxu0 0.0
  %870 = vmatprep.mubr.f32.mxu0 0.0
  %871 = vmatmul.mubr.f32.gmra.mrb[0].mxu0 %v804
  %v872 = vpop.f32.mrb[0].mxu0
  %v873 = vadd.f32 0.0, %v872
  %v874 = vpop.f32.mrb[0].mxu0
  %875 = vdwg.mxu0
  %v876 = vadd.f32 %v169, %v873
  %v877 = vxor.u32 %v876, 2147483648
  %v878 = vmul.f32 %v877, 1.442695
  %v879 = vpow.pop %v878
  %v880 = vadd.f32 %v879, 1.0
  %v881 = vrcp.pop %v880
  %v882 = vmul.f32 1.0, %v881
  %v883 = vtanh.pop %v876
  %v884 = vmul.f32 %v882, %v691
  %886 = vrot.lane.b32.xlu0 %v883, 64
  %v887 = vpop.permute.xlu0 %886
  %v889 = vmul.f32 %v882, %v887
  %891 = vrot.lane.b32.xlu0 %v889, 32
  %v892 = vpop.permute.xlu0 %891
  %v894 = vadd.f32 %v884, %v892
  %v895 = vtanh.pop %v894
  %897 = vrot.lane.b32.xlu0 %v895, 64
  %v898 = vpop.permute.xlu0 %897
  %v900 = vmul.f32 %v882, %v898
  %902 = vrot.lane.b32.xlu0 %v900, 32
  %v903 = vpop.permute.xlu0 %902
  %906 = vrot.lane.b32.xlu0 %v803, 64
  %v907 = vpop.permute.xlu0 %906
  %v909 = vsel %vm192, %v903, %v907
  %v911 = vsel %vm300, %v909, 0
  %913 = vmatprep.subr.mxu0 0.0
  %914 = vmatpush1.msra.mxu0 %v44
  %915 = vmatprep.subr.mxu0 0.0
  %916 = vmatpush1.msra.mxu0 %v45
  %917 = vmatprep.subr.mxu0 0.0
  %918 = vmatpush1.msra.mxu0 %v46
  %919 = vmatprep.subr.mxu0 0.0
  %920 = vmatpush1.msra.mxu0 %v47
  %921 = vmatprep.subr.mxu0 0.0
  %922 = vmatpush1.msra.mxu0 %v48
  %923 = vmatprep.subr.mxu0 0.0
  %924 = vmatpush1.msra.mxu0 %v49
  %925 = vmatprep.subr.mxu0 0.0
  %926 = vmatpush1.msra.mxu0 %v50
  %927 = vmatprep.subr.mxu0 0.0
  %928 = vmatpush1.msra.mxu0 %v51
  %929 = vmatprep.subr.mxu0 0.0
  %930 = vmatpush1.msra.mxu0 0.0
  %931 = vmatprep.subr.mxu0 0.0
  %932 = vmatpush1.msra.mxu0 0.0
  %933 = vmatprep.subr.mxu0 0.0
  %934 = vmatpush1.msra.mxu0 0.0
  %935 = vmatprep.subr.mxu0 0.0
  %936 = vmatpush1.msra.mxu0 0.0
  %937 = vmatprep.subr.mxu0 0.0
  %938 = vmatpush1.msra.mxu0 0.0
  %939 = vmatprep.subr.mxu0 0.0
  %940 = vmatpush1.msra.mxu0 0.0
  %941 = vmatprep.subr.mxu0 0.0
  %942 = vmatpush1.msra.mxu0 0.0
  %943 = vmatprep.subr.mxu0 0.0
  %944 = vmatpush1.msra.mxu0 0.0
  %945 = vmatprep.subr.mxu0 0.0
  %946 = vmatpush1.msra.mxu0 0.0
  %947 = vmatprep.subr.mxu0 0.0
  %948 = vmatpush1.msra.mxu0 0.0
  %949 = vmatprep.subr.mxu0 0.0
  %950 = vmatpush1.msra.mxu0 0.0
  %951 = vmatprep.subr.mxu0 0.0
  %952 = vmatpush1.msra.mxu0 0.0
  %953 = vmatprep.subr.mxu0 0.0
  %954 = vmatpush1.msra.mxu0 0.0
  %955 = vmatprep.subr.mxu0 0.0
  %956 = vmatpush1.msra.mxu0 0.0
  %957 = vmatprep.subr.mxu0 0.0
  %958 = vmatpush1.msra.mxu0 0.0
  %959 = vmatprep.subr.mxu0 0.0
  %960 = vmatpush1.msra.mxu0 0.0
  %961 = vmatprep.subr.mxu0 0.0
  %962 = vmatpush1.msra.mxu0 0.0
  %963 = vmatprep.subr.mxu0 0.0
  %964 = vmatpush1.msra.mxu0 0.0
  %965 = vmatprep.subr.mxu0 0.0
  %966 = vmatpush1.msra.mxu0 0.0
  %967 = vmatprep.subr.mxu0 0.0
  %968 = vmatpush1.msra.mxu0 0.0
  %969 = vmatprep.subr.mxu0 0.0
  %970 = vmatpush1.msra.mxu0 0.0
  %971 = vmatprep.subr.mxu0 0.0
  %972 = vmatpush1.msra.mxu0 0.0
  %973 = vmatprep.subr.mxu0 0.0
  %974 = vmatpush1.msra.mxu0 0.0
  %975 = vmatprep.subr.mxu0 0.0
  %976 = vmatpush1.msra.mxu0 0.0
  %977 = vmatprep.mubr.f32.mxu0 0.0
  %978 = vmatmul.mubr.f32.gmra.mrb[0].mxu0 %v911
  %v979 = vpop.f32.mrb[0].mxu0
  %v980 = vadd.f32 %v299, %v979
  %v981 = vpop.f32.mrb[0].mxu0
  %982 = vdwg.mxu0
  %v983 = vxor.u32 %v980, 2147483648
  %v984 = vmul.f32 %v983, 1.442695
  %v985 = vpow.pop %v984
  %v986 = vadd.f32 %v985, 1.0
  %v987 = vrcp.pop %v986
  %v988 = vmul.f32 1.0, %v987
  %v989 = vtanh.pop %v980
  %v990 = vmul.f32 %v988, %v797
  %992 = vrot.lane.b32.xlu0 %v989, 64
  %v993 = vpop.permute.xlu0 %992
  %v995 = vmul.f32 %v988, %v993
  %997 = vrot.lane.b32.xlu0 %v995, 32
  %v998 = vpop.permute.xlu0 %997
  %v1000 = vadd.f32 %v990, %v998
  %v1001 = vtanh.pop %v1000
  %1003 = vrot.lane.b32.xlu0 %v1001, 64
  %v1004 = vpop.permute.xlu0 %1003
  %v1006 = vmul.f32 %v988, %v1004
  %v1007 = vsel %vm192, %v903, 0
  %1009 = vmatprep.subr.mxu0 0.0
  %1010 = vmatpush1.msra.mxu0 %v40
  %1011 = vmatprep.subr.mxu0 0.0
  %1012 = vmatpush1.msra.mxu0 %v41
  %1013 = vmatprep.subr.mxu0 0.0
  %1014 = vmatpush1.msra.mxu0 %v42
  %1015 = vmatprep.subr.mxu0 0.0
  %1016 = vmatpush1.msra.mxu0 %v43
  %1017 = vmatprep.subr.mxu0 0.0
  %1018 = vmatpush1.msra.mxu0 0.0
  %1019 = vmatprep.subr.mxu0 0.0
  %1020 = vmatpush1.msra.mxu0 0.0
  %1021 = vmatprep.subr.mxu0 0.0
  %1022 = vmatpush1.msra.mxu0 0.0
  %1023 = vmatprep.subr.mxu0 0.0
  %1024 = vmatpush1.msra.mxu0 0.0
  %1025 = vmatprep.subr.mxu0 0.0
  %1026 = vmatpush1.msra.mxu0 0.0
  %1027 = vmatprep.subr.mxu0 0.0
  %1028 = vmatpush1.msra.mxu0 0.0
  %1029 = vmatprep.subr.mxu0 0.0
  %1030 = vmatpush1.msra.mxu0 0.0
  %1031 = vmatprep.subr.mxu0 0.0
  %1032 = vmatpush1.msra.mxu0 0.0
  %1033 = vmatprep.subr.mxu0 0.0
  %1034 = vmatpush1.msra.mxu0 0.0
  %1035 = vmatprep.subr.mxu0 0.0
  %1036 = vmatpush1.msra.mxu0 0.0
  %1037 = vmatprep.subr.mxu0 0.0
  %1038 = vmatpush1.msra.mxu0 0.0
  %1039 = vmatprep.subr.mxu0 0.0
  %1040 = vmatpush1.msra.mxu0 0.0
  %1041 = vmatprep.subr.mxu0 0.0
  %1042 = vmatpush1.msra.mxu0 0.0
  %1043 = vmatprep.subr.mxu0 0.0
  %1044 = vmatpush1.msra.mxu0 0.0
  %1045 = vmatprep.subr.mxu0 0.0
  %1046 = vmatpush1.msra.mxu0 0.0
  %1047 = vmatprep.subr.mxu0 0.0
  %1048 = vmatpush1.msra.mxu0 0.0
  %1049 = vmatprep.subr.mxu0 0.0
  %1050 = vmatpush1.msra.mxu0 0.0
  %1051 = vmatprep.subr.mxu0 0.0
  %1052 = vmatpush1.msra.mxu0 0.0
  %1053 = vmatprep.subr.mxu0 0.0
  %1054 = vmatpush1.msra.mxu0 0.0
  %1055 = vmatprep.subr.mxu0 0.0
  %1056 = vmatpush1.msra.mxu0 0.0
  %1057 = vmatprep.subr.mxu0 0.0
  %1058 = vmatpush1.msra.mxu0 0.0
  %1059 = vmatprep.subr.mxu0 0.0
  %1060 = vmatpush1.msra.mxu0 0.0
  %1061 = vmatprep.subr.mxu0 0.0
  %1062 = vmatpush1.msra.mxu0 0.0
  %1063 = vmatprep.subr.mxu0 0.0
  %1064 = vmatpush1.msra.mxu0 0.0
  %1065 = vmatprep.subr.mxu0 0.0
  %1066 = vmatpush1.msra.mxu0 0.0
  %1067 = vmatprep.subr.mxu0 0.0
  %1068 = vmatpush1.msra.mxu0 0.0
  %1069 = vmatprep.subr.mxu0 0.0
  %1070 = vmatpush1.msra.mxu0 0.0
  %1071 = vmatprep.subr.mxu0 0.0
  %1072 = vmatpush1.msra.mxu0 0.0
  %1073 = vmatprep.mubr.f32.mxu0 0.0
  %1074 = vmatmul.mubr.f32.gmra.mrb[0].mxu0 %v1007
  %v1075 = vpop.f32.mrb[0].mxu0
  %v1076 = vadd.f32 0.0, %v1075
  %v1077 = vpop.f32.mrb[0].mxu0
  %1078 = vdwg.mxu0
  %v1079 = vadd.f32 %v174, %v1076
  %v1080 = vxor.u32 %v1079, 2147483648
  %v1081 = vmul.f32 %v1080, 1.442695
  %v1082 = vpow.pop %v1081
  %v1083 = vadd.f32 %v1082, 1.0
  %v1084 = vrcp.pop %v1083
  %v1085 = vmul.f32 1.0, %v1084
  %v1086 = vtanh.pop %v1079
  %v1087 = vmul.f32 %v1085, %v894
  %1089 = vrot.lane.b32.xlu0 %v1086, 64
  %v1090 = vpop.permute.xlu0 %1089
  %v1092 = vmul.f32 %v1085, %v1090
  %1094 = vrot.lane.b32.xlu0 %v1092, 32
  %v1095 = vpop.permute.xlu0 %1094
  %v1097 = vadd.f32 %v1087, %v1095
  %v1098 = vtanh.pop %v1097
  %1100 = vrot.lane.b32.xlu0 %v1098, 64
  %v1101 = vpop.permute.xlu0 %1100
  %v1103 = vmul.f32 %v1085, %v1101
  %1105 = vrot.lane.b32.xlu0 %v1103, 32
  %v1106 = vpop.permute.xlu0 %1105
  %1109 = vrot.lane.b32.xlu0 %v1006, 64
  %v1110 = vpop.permute.xlu0 %1109
  %v1112 = vsel %vm192, %v1106, %v1110
  %v1114 = vsel %vm300, %v1112, 0
  %1116 = vmatprep.subr.mxu0 0.0
  %1117 = vmatpush1.msra.mxu0 %v44
  %1118 = vmatprep.subr.mxu0 0.0
  %1119 = vmatpush1.msra.mxu0 %v45
  %1120 = vmatprep.subr.mxu0 0.0
  %1121 = vmatpush1.msra.mxu0 %v46
  %1122 = vmatprep.subr.mxu0 0.0
  %1123 = vmatpush1.msra.mxu0 %v47
  %1124 = vmatprep.subr.mxu0 0.0
  %1125 = vmatpush1.msra.mxu0 %v48
  %1126 = vmatprep.subr.mxu0 0.0
  %1127 = vmatpush1.msra.mxu0 %v49
  %1128 = vmatprep.subr.mxu0 0.0
  %1129 = vmatpush1.msra.mxu0 %v50
  %1130 = vmatprep.subr.mxu0 0.0
  %1131 = vmatpush1.msra.mxu0 %v51
  %1132 = vmatprep.subr.mxu0 0.0
  %1133 = vmatpush1.msra.mxu0 0.0
  %1134 = vmatprep.subr.mxu0 0.0
  %1135 = vmatpush1.msra.mxu0 0.0
  %1136 = vmatprep.subr.mxu0 0.0
  %1137 = vmatpush1.msra.mxu0 0.0
  %1138 = vmatprep.subr.mxu0 0.0
  %1139 = vmatpush1.msra.mxu0 0.0
  %1140 = vmatprep.subr.mxu0 0.0
  %1141 = vmatpush1.msra.mxu0 0.0
  %1142 = vmatprep.subr.mxu0 0.0
  %1143 = vmatpush1.msra.mxu0 0.0
  %1144 = vmatprep.subr.mxu0 0.0
  %1145 = vmatpush1.msra.mxu0 0.0
  %1146 = vmatprep.subr.mxu0 0.0
  %1147 = vmatpush1.msra.mxu0 0.0
  %1148 = vmatprep.subr.mxu0 0.0
  %1149 = vmatpush1.msra.mxu0 0.0
  %1150 = vmatprep.subr.mxu0 0.0
  %1151 = vmatpush1.msra.mxu0 0.0
  %1152 = vmatprep.subr.mxu0 0.0
  %1153 = vmatpush1.msra.mxu0 0.0
  %1154 = vmatprep.subr.mxu0 0.0
  %1155 = vmatpush1.msra.mxu0 0.0
  %1156 = vmatprep.subr.mxu0 0.0
  %1157 = vmatpush1.msra.mxu0 0.0
  %1158 = vmatprep.subr.mxu0 0.0
  %1159 = vmatpush1.msra.mxu0 0.0
  %1160 = vmatprep.subr.mxu0 0.0
  %1161 = vmatpush1.msra.mxu0 0.0
  %1162 = vmatprep.subr.mxu0 0.0
  %1163 = vmatpush1.msra.mxu0 0.0
  %1164 = vmatprep.subr.mxu0 0.0
  %1165 = vmatpush1.msra.mxu0 0.0
  %1166 = vmatprep.subr.mxu0 0.0
  %1167 = vmatpush1.msra.mxu0 0.0
  %1168 = vmatprep.subr.mxu0 0.0
  %1169 = vmatpush1.msra.mxu0 0.0
  %1170 = vmatprep.subr.mxu0 0.0
  %1171 = vmatpush1.msra.mxu0 0.0
  %1172 = vmatprep.subr.mxu0 0.0
  %1173 = vmatpush1.msra.mxu0 0.0
  %1174 = vmatprep.subr.mxu0 0.0
  %1175 = vmatpush1.msra.mxu0 0.0
  %1176 = vmatprep.subr.mxu0 0.0
  %1177 = vmatpush1.msra.mxu0 0.0
  %1178 = vmatprep.subr.mxu0 0.0
  %1179 = vmatpush1.msra.mxu0 0.0
  %1180 = vmatprep.mubr.f32.mxu0 0.0
  %1181 = vmatmul.mubr.f32.gmra.mrb[0].mxu0 %v1114
  %v1182 = vpop.f32.mrb[0].mxu0
  %v1183 = vadd.f32 %v299, %v1182
  %v1184 = vpop.f32.mrb[0].mxu0
  %1185 = vdwg.mxu0
  %v1186 = vxor.u32 %v1183, 2147483648
  %v1187 = vmul.f32 %v1186, 1.442695
  %v1188 = vpow.pop %v1187
  %v1189 = vadd.f32 %v1188, 1.0
  %v1190 = vrcp.pop %v1189
  %v1191 = vmul.f32 1.0, %v1190
  %v1192 = vtanh.pop %v1183
  %v1193 = vmul.f32 %v1191, %v1000
  %1195 = vrot.lane.b32.xlu0 %v1192, 64
  %v1196 = vpop.permute.xlu0 %1195
  %v1198 = vmul.f32 %v1191, %v1196
  %1200 = vrot.lane.b32.xlu0 %v1198, 32
  %v1201 = vpop.permute.xlu0 %1200
  %v1203 = vadd.f32 %v1193, %v1201
  %v1204 = vtanh.pop %v1203
  %1206 = vrot.lane.b32.xlu0 %v1204, 64
  %v1207 = vpop.permute.xlu0 %1206
  %v1209 = vmul.f32 %v1191, %v1207
  %v1210 = vsel %vm192, %v1106, 0
  %1212 = vmatprep.subr.mxu0 0.0
  %1213 = vmatpush1.msra.mxu0 %v40
  %1214 = vmatprep.subr.mxu0 0.0
  %1215 = vmatpush1.msra.mxu0 %v41
  %1216 = vmatprep.subr.mxu0 0.0
  %1217 = vmatpush1.msra.mxu0 %v42
  %1218 = vmatprep.subr.mxu0 0.0
  %1219 = vmatpush1.msra.mxu0 %v43
  %1220 = vmatprep.subr.mxu0 0.0
  %1221 = vmatpush1.msra.mxu0 0.0
  %1222 = vmatprep.subr.mxu0 0.0
  %1223 = vmatpush1.msra.mxu0 0.0
  %1224 = vmatprep.subr.mxu0 0.0
  %1225 = vmatpush1.msra.mxu0 0.0
  %1226 = vmatprep.subr.mxu0 0.0
  %1227 = vmatpush1.msra.mxu0 0.0
  %1228 = vmatprep.subr.mxu0 0.0
  %1229 = vmatpush1.msra.mxu0 0.0
  %1230 = vmatprep.subr.mxu0 0.0
  %1231 = vmatpush1.msra.mxu0 0.0
  %1232 = vmatprep.subr.mxu0 0.0
  %1233 = vmatpush1.msra.mxu0 0.0
  %1234 = vmatprep.subr.mxu0 0.0
  %1235 = vmatpush1.msra.mxu0 0.0
  %1236 = vmatprep.subr.mxu0 0.0
  %1237 = vmatpush1.msra.mxu0 0.0
  %1238 = vmatprep.subr.mxu0 0.0
  %1239 = vmatpush1.msra.mxu0 0.0
  %1240 = vmatprep.subr.mxu0 0.0
  %1241 = vmatpush1.msra.mxu0 0.0
  %1242 = vmatprep.subr.mxu0 0.0
  %1243 = vmatpush1.msra.mxu0 0.0
  %1244 = vmatprep.subr.mxu0 0.0
  %1245 = vmatpush1.msra.mxu0 0.0
  %1246 = vmatprep.subr.mxu0 0.0
  %1247 = vmatpush1.msra.mxu0 0.0
  %1248 = vmatprep.subr.mxu0 0.0
  %1249 = vmatpush1.msra.mxu0 0.0
  %1250 = vmatprep.subr.mxu0 0.0
  %1251 = vmatpush1.msra.mxu0 0.0
  %1252 = vmatprep.subr.mxu0 0.0
  %1253 = vmatpush1.msra.mxu0 0.0
  %1254 = vmatprep.subr.mxu0 0.0
  %1255 = vmatpush1.msra.mxu0 0.0
  %1256 = vmatprep.subr.mxu0 0.0
  %1257 = vmatpush1.msra.mxu0 0.0
  %1258 = vmatprep.subr.mxu0 0.0
  %1259 = vmatpush1.msra.mxu0 0.0
  %1260 = vmatprep.subr.mxu0 0.0
  %1261 = vmatpush1.msra.mxu0 0.0
  %1262 = vmatprep.subr.mxu0 0.0
  %1263 = vmatpush1.msra.mxu0 0.0
  %1264 = vmatprep.subr.mxu0 0.0
  %1265 = vmatpush1.msra.mxu0 0.0
  %1266 = vmatprep.subr.mxu0 0.0
  %1267 = vmatpush1.msra.mxu0 0.0
  %1268 = vmatprep.subr.mxu0 0.0
  %1269 = vmatpush1.msra.mxu0 0.0
  %1270 = vmatprep.subr.mxu0 0.0
  %1271 = vmatpush1.msra.mxu0 0.0
  %1272 = vmatprep.subr.mxu0 0.0
  %1273 = vmatpush1.msra.mxu0 0.0
  %1274 = vmatprep.subr.mxu0 0.0
  %1275 = vmatpush1.msra.mxu0 0.0
  %1276 = vmatprep.mubr.f32.mxu0 0.0
  %1277 = vmatmul.mubr.f32.gmra.mrb[0].mxu0 %v1210
  %v1278 = vpop.f32.mrb[0].mxu0
  %v1279 = vadd.f32 0.0, %v1278
  %v1280 = vpop.f32.mrb[0].mxu0
  %1281 = vdwg.mxu0
  %v1282 = vadd.f32 %v179, %v1279
  %v1283 = vxor.u32 %v1282, 2147483648
  %v1284 = vmul.f32 %v1283, 1.442695
  %v1285 = vpow.pop %v1284
  %v1286 = vadd.f32 %v1285, 1.0
  %v1287 = vrcp.pop %v1286
  %v1288 = vmul.f32 1.0, %v1287
  %v1289 = vtanh.pop %v1282
  %v1290 = vmul.f32 %v1288, %v1097
  %1292 = vrot.lane.b32.xlu0 %v1289, 64
  %v1293 = vpop.permute.xlu0 %1292
  %v1295 = vmul.f32 %v1288, %v1293
  %1297 = vrot.lane.b32.xlu0 %v1295, 32
  %v1298 = vpop.permute.xlu0 %1297
  %v1300 = vadd.f32 %v1290, %v1298
  %v1301 = vtanh.pop %v1300
  %1303 = vrot.lane.b32.xlu0 %v1301, 64
  %v1304 = vpop.permute.xlu0 %1303
  %v1306 = vmul.f32 %v1288, %v1304
  %1308 = vrot.lane.b32.xlu0 %v1306, 32
  %v1309 = vpop.permute.xlu0 %1308
  %1312 = vrot.lane.b32.xlu0 %v1209, 64
  %v1313 = vpop.permute.xlu0 %1312
  %v1315 = vsel %vm192, %v1309, %v1313
  %v1317 = vsel %vm300, %v1315, 0
  %1319 = vmatprep.subr.mxu0 0.0
  %1320 = vmatpush1.msra.mxu0 %v44
  %1321 = vmatprep.subr.mxu0 0.0
  %1322 = vmatpush1.msra.mxu0 %v45
  %1323 = vmatprep.subr.mxu0 0.0
  %1324 = vmatpush1.msra.mxu0 %v46
  %1325 = vmatprep.subr.mxu0 0.0
  %1326 = vmatpush1.msra.mxu0 %v47
  %1327 = vmatprep.subr.mxu0 0.0
  %1328 = vmatpush1.msra.mxu0 %v48
  %1329 = vmatprep.subr.mxu0 0.0
  %1330 = vmatpush1.msra.mxu0 %v49
  %1331 = vmatprep.subr.mxu0 0.0
  %1332 = vmatpush1.msra.mxu0 %v50
  %1333 = vmatprep.subr.mxu0 0.0
  %1334 = vmatpush1.msra.mxu0 %v51
  %1335 = vmatprep.subr.mxu0 0.0
  %1336 = vmatpush1.msra.mxu0 0.0
  %1337 = vmatprep.subr.mxu0 0.0
  %1338 = vmatpush1.msra.mxu0 0.0
  %1339 = vmatprep.subr.mxu0 0.0
  %1340 = vmatpush1.msra.mxu0 0.0
  %1341 = vmatprep.subr.mxu0 0.0
  %1342 = vmatpush1.msra.mxu0 0.0
  %1343 = vmatprep.subr.mxu0 0.0
  %1344 = vmatpush1.msra.mxu0 0.0
  %1345 = vmatprep.subr.mxu0 0.0
  %1346 = vmatpush1.msra.mxu0 0.0
  %1347 = vmatprep.subr.mxu0 0.0
  %1348 = vmatpush1.msra.mxu0 0.0
  %1349 = vmatprep.subr.mxu0 0.0
  %1350 = vmatpush1.msra.mxu0 0.0
  %1351 = vmatprep.subr.mxu0 0.0
  %1352 = vmatpush1.msra.mxu0 0.0
  %1353 = vmatprep.subr.mxu0 0.0
  %1354 = vmatpush1.msra.mxu0 0.0
  %1355 = vmatprep.subr.mxu0 0.0
  %1356 = vmatpush1.msra.mxu0 0.0
  %1357 = vmatprep.subr.mxu0 0.0
  %1358 = vmatpush1.msra.mxu0 0.0
  %1359 = vmatprep.subr.mxu0 0.0
  %1360 = vmatpush1.msra.mxu0 0.0
  %1361 = vmatprep.subr.mxu0 0.0
  %1362 = vmatpush1.msra.mxu0 0.0
  %1363 = vmatprep.subr.mxu0 0.0
  %1364 = vmatpush1.msra.mxu0 0.0
  %1365 = vmatprep.subr.mxu0 0.0
  %1366 = vmatpush1.msra.mxu0 0.0
  %1367 = vmatprep.subr.mxu0 0.0
  %1368 = vmatpush1.msra.mxu0 0.0
  %1369 = vmatprep.subr.mxu0 0.0
  %1370 = vmatpush1.msra.mxu0 0.0
  %1371 = vmatprep.subr.mxu0 0.0
  %1372 = vmatpush1.msra.mxu0 0.0
  %1373 = vmatprep.subr.mxu0 0.0
  %1374 = vmatpush1.msra.mxu0 0.0
  %1375 = vmatprep.subr.mxu0 0.0
  %1376 = vmatpush1.msra.mxu0 0.0
  %1377 = vmatprep.subr.mxu0 0.0
  %1378 = vmatpush1.msra.mxu0 0.0
  %1379 = vmatprep.subr.mxu0 0.0
  %1380 = vmatpush1.msra.mxu0 0.0
  %1381 = vmatprep.subr.mxu0 0.0
  %1382 = vmatpush1.msra.mxu0 0.0
  %1383 = vmatprep.mubr.f32.mxu0 0.0
  %1384 = vmatmul.mubr.f32.gmra.mrb[0].mxu0 %v1317
  %v1385 = vpop.f32.mrb[0].mxu0
  %v1386 = vadd.f32 %v299, %v1385
  %v1387 = vpop.f32.mrb[0].mxu0
  %1388 = vdwg.mxu0
  %v1389 = vxor.u32 %v1386, 2147483648
  %v1390 = vmul.f32 %v1389, 1.442695
  %v1391 = vpow.pop %v1390
  %v1392 = vadd.f32 %v1391, 1.0
  %v1393 = vrcp.pop %v1392
  %v1394 = vmul.f32 1.0, %v1393
  %v1395 = vtanh.pop %v1386
  %v1396 = vmul.f32 %v1394, %v1203
  %1398 = vrot.lane.b32.xlu0 %v1395, 64
  %v1399 = vpop.permute.xlu0 %1398
  %v1401 = vmul.f32 %v1394, %v1399
  %1403 = vrot.lane.b32.xlu0 %v1401, 32
  %v1404 = vpop.permute.xlu0 %1403
  %v1406 = vadd.f32 %v1396, %v1404
  %v1407 = vtanh.pop %v1406
  %1409 = vrot.lane.b32.xlu0 %v1407, 64
  %v1410 = vpop.permute.xlu0 %1409
  %v1412 = vmul.f32 %v1394, %v1410
  %v1413 = vsel %vm192, %v1309, 0
  %1415 = vmatprep.subr.mxu0 0.0
  %1416 = vmatpush1.msra.mxu0 %v40
  %1417 = vmatprep.subr.mxu0 0.0
  %1418 = vmatpush1.msra.mxu0 %v41
  %1419 = vmatprep.subr.mxu0 0.0
  %1420 = vmatpush1.msra.mxu0 %v42
  %1421 = vmatprep.subr.mxu0 0.0
  %1422 = vmatpush1.msra.mxu0 %v43
  %1423 = vmatprep.subr.mxu0 0.0
  %1424 = vmatpush1.msra.mxu0 0.0
  %1425 = vmatprep.subr.mxu0 0.0
  %1426 = vmatpush1.msra.mxu0 0.0
  %1427 = vmatprep.subr.mxu0 0.0
  %1428 = vmatpush1.msra.mxu0 0.0
  %1429 = vmatprep.subr.mxu0 0.0
  %1430 = vmatpush1.msra.mxu0 0.0
  %1431 = vmatprep.subr.mxu0 0.0
  %1432 = vmatpush1.msra.mxu0 0.0
  %1433 = vmatprep.subr.mxu0 0.0
  %1434 = vmatpush1.msra.mxu0 0.0
  %1435 = vmatprep.subr.mxu0 0.0
  %1436 = vmatpush1.msra.mxu0 0.0
  %1437 = vmatprep.subr.mxu0 0.0
  %1438 = vmatpush1.msra.mxu0 0.0
  %1439 = vmatprep.subr.mxu0 0.0
  %1440 = vmatpush1.msra.mxu0 0.0
  %1441 = vmatprep.subr.mxu0 0.0
  %1442 = vmatpush1.msra.mxu0 0.0
  %1443 = vmatprep.subr.mxu0 0.0
  %1444 = vmatpush1.msra.mxu0 0.0
  %1445 = vmatprep.subr.mxu0 0.0
  %1446 = vmatpush1.msra.mxu0 0.0
  %1447 = vmatprep.subr.mxu0 0.0
  %1448 = vmatpush1.msra.mxu0 0.0
  %1449 = vmatprep.subr.mxu0 0.0
  %1450 = vmatpush1.msra.mxu0 0.0
  %1451 = vmatprep.subr.mxu0 0.0
  %1452 = vmatpush1.msra.mxu0 0.0
  %1453 = vmatprep.subr.mxu0 0.0
  %1454 = vmatpush1.msra.mxu0 0.0
  %1455 = vmatprep.subr.mxu0 0.0
  %1456 = vmatpush1.msra.mxu0 0.0
  %1457 = vmatprep.subr.mxu0 0.0
  %1458 = vmatpush1.msra.mxu0 0.0
  %1459 = vmatprep.subr.mxu0 0.0
  %1460 = vmatpush1.msra.mxu0 0.0
  %1461 = vmatprep.subr.mxu0 0.0
  %1462 = vmatpush1.msra.mxu0 0.0
  %1463 = vmatprep.subr.mxu0 0.0
  %1464 = vmatpush1.msra.mxu0 0.0
  %1465 = vmatprep.subr.mxu0 0.0
  %1466 = vmatpush1.msra.mxu0 0.0
  %1467 = vmatprep.subr.mxu0 0.0
  %1468 = vmatpush1.msra.mxu0 0.0
  %1469 = vmatprep.subr.mxu0 0.0
  %1470 = vmatpush1.msra.mxu0 0.0
  %1471 = vmatprep.subr.mxu0 0.0
  %1472 = vmatpush1.msra.mxu0 0.0
  %1473 = vmatprep.subr.mxu0 0.0
  %1474 = vmatpush1.msra.mxu0 0.0
  %1475 = vmatprep.subr.mxu0 0.0
  %1476 = vmatpush1.msra.mxu0 0.0
  %1477 = vmatprep.subr.mxu0 0.0
  %1478 = vmatpush1.msra.mxu0 0.0
  %1479 = vmatprep.mubr.f32.mxu0 0.0
  %1480 = vmatmul.mubr.f32.gmra.mrb[0].mxu0 %v1413
  %v1481 = vpop.f32.mrb[0].mxu0
  %v1482 = vadd.f32 0.0, %v1481
  %v1483 = vpop.f32.mrb[0].mxu0
  %1484 = vdwg.mxu0
  %v1485 = vadd.f32 %v184, %v1482
  %v1486 = vxor.u32 %v1485, 2147483648
  %v1487 = vmul.f32 %v1486, 1.442695
  %v1488 = vpow.pop %v1487
  %v1489 = vadd.f32 %v1488, 1.0
  %v1490 = vrcp.pop %v1489
  %v1491 = vmul.f32 1.0, %v1490
  %v1492 = vtanh.pop %v1485
  %v1493 = vmul.f32 %v1491, %v1300
  %1495 = vrot.lane.b32.xlu0 %v1492, 64
  %v1496 = vpop.permute.xlu0 %1495
  %v1498 = vmul.f32 %v1491, %v1496
  %1500 = vrot.lane.b32.xlu0 %v1498, 32
  %v1501 = vpop.permute.xlu0 %1500
  %v1503 = vadd.f32 %v1493, %v1501
  %v1504 = vtanh.pop %v1503
  %1506 = vrot.lane.b32.xlu0 %v1504, 64
  %v1507 = vpop.permute.xlu0 %1506
  %v1509 = vmul.f32 %v1491, %v1507
  %1511 = vrot.lane.b32.xlu0 %v1509, 32
  %v1512 = vpop.permute.xlu0 %1511
  %1515 = vrot.lane.b32.xlu0 %v1412, 64
  %v1516 = vpop.permute.xlu0 %1515
  %v1518 = vsel %vm192, %v1512, %v1516
  %v1520 = vsel %vm300, %v1518, 0
  %1522 = vmatprep.subr.mxu0 0.0
  %1523 = vmatpush1.msra.mxu0 %v44
  %1524 = vmatprep.subr.mxu0 0.0
  %1525 = vmatpush1.msra.mxu0 %v45
  %1526 = vmatprep.subr.mxu0 0.0
  %1527 = vmatpush1.msra.mxu0 %v46
  %1528 = vmatprep.subr.mxu0 0.0
  %1529 = vmatpush1.msra.mxu0 %v47
  %1530 = vmatprep.subr.mxu0 0.0
  %1531 = vmatpush1.msra.mxu0 %v48
  %1532 = vmatprep.subr.mxu0 0.0
  %1533 = vmatpush1.msra.mxu0 %v49
  %1534 = vmatprep.subr.mxu0 0.0
  %1535 = vmatpush1.msra.mxu0 %v50
  %1536 = vmatprep.subr.mxu0 0.0
  %1537 = vmatpush1.msra.mxu0 %v51
  %1538 = vmatprep.subr.mxu0 0.0
  %1539 = vmatpush1.msra.mxu0 0.0
  %1540 = vmatprep.subr.mxu0 0.0
  %1541 = vmatpush1.msra.mxu0 0.0
  %1542 = vmatprep.subr.mxu0 0.0
  %1543 = vmatpush1.msra.mxu0 0.0
  %1544 = vmatprep.subr.mxu0 0.0
  %1545 = vmatpush1.msra.mxu0 0.0
  %1546 = vmatprep.subr.mxu0 0.0
  %1547 = vmatpush1.msra.mxu0 0.0
  %1548 = vmatprep.subr.mxu0 0.0
  %1549 = vmatpush1.msra.mxu0 0.0
  %1550 = vmatprep.subr.mxu0 0.0
  %1551 = vmatpush1.msra.mxu0 0.0
  %1552 = vmatprep.subr.mxu0 0.0
  %1553 = vmatpush1.msra.mxu0 0.0
  %1554 = vmatprep.subr.mxu0 0.0
  %1555 = vmatpush1.msra.mxu0 0.0
  %1556 = vmatprep.subr.mxu0 0.0
  %1557 = vmatpush1.msra.mxu0 0.0
  %1558 = vmatprep.subr.mxu0 0.0
  %1559 = vmatpush1.msra.mxu0 0.0
  %1560 = vmatprep.subr.mxu0 0.0
  %1561 = vmatpush1.msra.mxu0 0.0
  %1562 = vmatprep.subr.mxu0 0.0
  %1563 = vmatpush1.msra.mxu0 0.0
  %1564 = vmatprep.subr.mxu0 0.0
  %1565 = vmatpush1.msra.mxu0 0.0
  %1566 = vmatprep.subr.mxu0 0.0
  %1567 = vmatpush1.msra.mxu0 0.0
  %1568 = vmatprep.subr.mxu0 0.0
  %1569 = vmatpush1.msra.mxu0 0.0
  %1570 = vmatprep.subr.mxu0 0.0
  %1571 = vmatpush1.msra.mxu0 0.0
  %1572 = vmatprep.subr.mxu0 0.0
  %1573 = vmatpush1.msra.mxu0 0.0
  %1574 = vmatprep.subr.mxu0 0.0
  %1575 = vmatpush1.msra.mxu0 0.0
  %1576 = vmatprep.subr.mxu0 0.0
  %1577 = vmatpush1.msra.mxu0 0.0
  %1578 = vmatprep.subr.mxu0 0.0
  %1579 = vmatpush1.msra.mxu0 0.0
  %1580 = vmatprep.subr.mxu0 0.0
  %1581 = vmatpush1.msra.mxu0 0.0
  %1582 = vmatprep.subr.mxu0 0.0
  %1583 = vmatpush1.msra.mxu0 0.0
  %1584 = vmatprep.subr.mxu0 0.0
  %1585 = vmatpush1.msra.mxu0 0.0
  %1586 = vmatprep.mubr.f32.mxu0 0.0
  %1587 = vmatmul.mubr.f32.gmra.mrb[0].mxu0 %v1520
  %v1588 = vpop.f32.mrb[0].mxu0
  %v1589 = vadd.f32 %v299, %v1588
  %v1590 = vpop.f32.mrb[0].mxu0
  %1591 = vdwg.mxu0
  %v1592 = vxor.u32 %v1589, 2147483648
  %v1593 = vmul.f32 %v1592, 1.442695
  %v1594 = vpow.pop %v1593
  %v1595 = vadd.f32 %v1594, 1.0
  %v1596 = vrcp.pop %v1595
  %v1597 = vmul.f32 1.0, %v1596
  %v1598 = vtanh.pop %v1589
  %v1599 = vmul.f32 %v1597, %v1406
  %1601 = vrot.lane.b32.xlu0 %v1598, 64
  %v1602 = vpop.permute.xlu0 %1601
  %v1604 = vmul.f32 %v1597, %v1602
  %1606 = vrot.lane.b32.xlu0 %v1604, 32
  %v1607 = vpop.permute.xlu0 %1606
  %v1609 = vadd.f32 %v1599, %v1607
  %v1610 = vtanh.pop %v1609
  %1612 = vrot.lane.b32.xlu0 %v1610, 64
  %v1613 = vpop.permute.xlu0 %1612
  %v1615 = vmul.f32 %v1597, %v1613
  %v1616 = vsel %vm192, %v1512, 0
  %1618 = vmatprep.subr.mxu0 0.0
  %1619 = vmatpush1.msra.mxu0 %v40
  %1620 = vmatprep.subr.mxu0 0.0
  %1621 = vmatpush1.msra.mxu0 %v41
  %1622 = vmatprep.subr.mxu0 0.0
  %1623 = vmatpush1.msra.mxu0 %v42
  %1624 = vmatprep.subr.mxu0 0.0
  %1625 = vmatpush1.msra.mxu0 %v43
  %1626 = vmatprep.subr.mxu0 0.0
  %1627 = vmatpush1.msra.mxu0 0.0
  %1628 = vmatprep.subr.mxu0 0.0
  %1629 = vmatpush1.msra.mxu0 0.0
  %1630 = vmatprep.subr.mxu0 0.0
  %1631 = vmatpush1.msra.mxu0 0.0
  %1632 = vmatprep.subr.mxu0 0.0
  %1633 = vmatpush1.msra.mxu0 0.0
  %1634 = vmatprep.subr.mxu0 0.0
  %1635 = vmatpush1.msra.mxu0 0.0
  %1636 = vmatprep.subr.mxu0 0.0
  %1637 = vmatpush1.msra.mxu0 0.0
  %1638 = vmatprep.subr.mxu0 0.0
  %1639 = vmatpush1.msra.mxu0 0.0
  %1640 = vmatprep.subr.mxu0 0.0
  %1641 = vmatpush1.msra.mxu0 0.0
  %1642 = vmatprep.subr.mxu0 0.0
  %1643 = vmatpush1.msra.mxu0 0.0
  %1644 = vmatprep.subr.mxu0 0.0
  %1645 = vmatpush1.msra.mxu0 0.0
  %1646 = vmatprep.subr.mxu0 0.0
  %1647 = vmatpush1.msra.mxu0 0.0
  %1648 = vmatprep.subr.mxu0 0.0
  %1649 = vmatpush1.msra.mxu0 0.0
  %1650 = vmatprep.subr.mxu0 0.0
  %1651 = vmatpush1.msra.mxu0 0.0
  %1652 = vmatprep.subr.mxu0 0.0
  %1653 = vmatpush1.msra.mxu0 0.0
  %1654 = vmatprep.subr.mxu0 0.0
  %1655 = vmatpush1.msra.mxu0 0.0
  %1656 = vmatprep.subr.mxu0 0.0
  %1657 = vmatpush1.msra.mxu0 0.0
  %1658 = vmatprep.subr.mxu0 0.0
  %1659 = vmatpush1.msra.mxu0 0.0
  %1660 = vmatprep.subr.mxu0 0.0
  %1661 = vmatpush1.msra.mxu0 0.0
  %1662 = vmatprep.subr.mxu0 0.0
  %1663 = vmatpush1.msra.mxu0 0.0
  %1664 = vmatprep.subr.mxu0 0.0
  %1665 = vmatpush1.msra.mxu0 0.0
  %1666 = vmatprep.subr.mxu0 0.0
  %1667 = vmatpush1.msra.mxu0 0.0
  %1668 = vmatprep.subr.mxu0 0.0
  %1669 = vmatpush1.msra.mxu0 0.0
  %1670 = vmatprep.subr.mxu0 0.0
  %1671 = vmatpush1.msra.mxu0 0.0
  %1672 = vmatprep.subr.mxu0 0.0
  %1673 = vmatpush1.msra.mxu0 0.0
  %1674 = vmatprep.subr.mxu0 0.0
  %1675 = vmatpush1.msra.mxu0 0.0
  %1676 = vmatprep.subr.mxu0 0.0
  %1677 = vmatpush1.msra.mxu0 0.0
  %1678 = vmatprep.subr.mxu0 0.0
  %1679 = vmatpush1.msra.mxu0 0.0
  %1680 = vmatprep.subr.mxu0 0.0
  %1681 = vmatpush1.msra.mxu0 0.0
  %1682 = vmatprep.mubr.f32.mxu0 0.0
  %1683 = vmatmul.mubr.f32.gmra.mrb[0].mxu0 %v1616
  %v1684 = vpop.f32.mrb[0].mxu0
  %v1685 = vadd.f32 0.0, %v1684
  %v1686 = vpop.f32.mrb[0].mxu0
  %1687 = vdwg.mxu0
  %v1688 = vadd.f32 %v189, %v1685
  %v1689 = vxor.u32 %v1688, 2147483648
  %v1690 = vmul.f32 %v1689, 1.442695
  %v1691 = vpow.pop %v1690
  %v1692 = vadd.f32 %v1691, 1.0
  %v1693 = vrcp.pop %v1692
  %v1694 = vmul.f32 1.0, %v1693
  %v1695 = vtanh.pop %v1688
  %v1696 = vmul.f32 %v1694, %v1503
  %1698 = vrot.lane.b32.xlu0 %v1695, 64
  %v1699 = vpop.permute.xlu0 %1698
  %v1701 = vmul.f32 %v1694, %v1699
  %1703 = vrot.lane.b32.xlu0 %v1701, 32
  %v1704 = vpop.permute.xlu0 %1703
  %v1706 = vadd.f32 %v1696, %v1704
  %v1707 = vtanh.pop %v1706
  %1709 = vrot.lane.b32.xlu0 %v1707, 64
  %v1710 = vpop.permute.xlu0 %1709
  %v1712 = vmul.f32 %v1694, %v1710
  %1714 = vrot.lane.b32.xlu0 %v1712, 32
  %v1715 = vpop.permute.xlu0 %1714
  %1718 = vrot.lane.b32.xlu0 %v1615, 64
  %v1719 = vpop.permute.xlu0 %1718
  %v1721 = vsel %vm192, %v1715, %v1719
  %v1723 = vsel %vm300, %v1721, 0
  %1725 = vmatprep.subr.mxu0 0.0
  %1726 = vmatpush1.msra.mxu0 %v44
  %1727 = vmatprep.subr.mxu0 0.0
  %1728 = vmatpush1.msra.mxu0 %v45
  %1729 = vmatprep.subr.mxu0 0.0
  %1730 = vmatpush1.msra.mxu0 %v46
  %1731 = vmatprep.subr.mxu0 0.0
  %1732 = vmatpush1.msra.mxu0 %v47
  %1733 = vmatprep.subr.mxu0 0.0
  %1734 = vmatpush1.msra.mxu0 %v48
  %1735 = vmatprep.subr.mxu0 0.0
  %1736 = vmatpush1.msra.mxu0 %v49
  %1737 = vmatprep.subr.mxu0 0.0
  %1738 = vmatpush1.msra.mxu0 %v50
  %1739 = vmatprep.subr.mxu0 0.0
  %1740 = vmatpush1.msra.mxu0 %v51
  %1741 = vmatprep.subr.mxu0 0.0
  %1742 = vmatpush1.msra.mxu0 0.0
  %1743 = vmatprep.subr.mxu0 0.0
  %1744 = vmatpush1.msra.mxu0 0.0
  %1745 = vmatprep.subr.mxu0 0.0
  %1746 = vmatpush1.msra.mxu0 0.0
  %1747 = vmatprep.subr.mxu0 0.0
  %1748 = vmatpush1.msra.mxu0 0.0
  %1749 = vmatprep.subr.mxu0 0.0
  %1750 = vmatpush1.msra.mxu0 0.0
  %1751 = vmatprep.subr.mxu0 0.0
  %1752 = vmatpush1.msra.mxu0 0.0
  %1753 = vmatprep.subr.mxu0 0.0
  %1754 = vmatpush1.msra.mxu0 0.0
  %1755 = vmatprep.subr.mxu0 0.0
  %1756 = vmatpush1.msra.mxu0 0.0
  %1757 = vmatprep.subr.mxu0 0.0
  %1758 = vmatpush1.msra.mxu0 0.0
  %1759 = vmatprep.subr.mxu0 0.0
  %1760 = vmatpush1.msra.mxu0 0.0
  %1761 = vmatprep.subr.mxu0 0.0
  %1762 = vmatpush1.msra.mxu0 0.0
  %1763 = vmatprep.subr.mxu0 0.0
  %1764 = vmatpush1.msra.mxu0 0.0
  %1765 = vmatprep.subr.mxu0 0.0
  %1766 = vmatpush1.msra.mxu0 0.0
  %1767 = vmatprep.subr.mxu0 0.0
  %1768 = vmatpush1.msra.mxu0 0.0
  %1769 = vmatprep.subr.mxu0 0.0
  %1770 = vmatpush1.msra.mxu0 0.0
  %1771 = vmatprep.subr.mxu0 0.0
  %1772 = vmatpush1.msra.mxu0 0.0
  %1773 = vmatprep.subr.mxu0 0.0
  %1774 = vmatpush1.msra.mxu0 0.0
  %1775 = vmatprep.subr.mxu0 0.0
  %1776 = vmatpush1.msra.mxu0 0.0
  %1777 = vmatprep.subr.mxu0 0.0
  %1778 = vmatpush1.msra.mxu0 0.0
  %1779 = vmatprep.subr.mxu0 0.0
  %1780 = vmatpush1.msra.mxu0 0.0
  %1781 = vmatprep.subr.mxu0 0.0
  %1782 = vmatpush1.msra.mxu0 0.0
  %1783 = vmatprep.subr.mxu0 0.0
  %1784 = vmatpush1.msra.mxu0 0.0
  %1785 = vmatprep.subr.mxu0 0.0
  %1786 = vmatpush1.msra.mxu0 0.0
  %1787 = vmatprep.subr.mxu0 0.0
  %1788 = vmatpush1.msra.mxu0 0.0
  %1789 = vmatprep.mubr.f32.mxu0 0.0
  %1790 = vmatmul.mubr.f32.gmra.mrb[0].mxu0 %v1723
  %v1791 = vpop.f32.mrb[0].mxu0
  %v1792 = vadd.f32 %v299, %v1791
  %v1793 = vpop.f32.mrb[0].mxu0
  %1794 = vdwg.mxu0
  %v1795 = vxor.u32 %v1792, 2147483648
  %v1796 = vmul.f32 %v1795, 1.442695
  %v1797 = vpow.pop %v1796
  %v1798 = vadd.f32 %v1797, 1.0
  %v1799 = vrcp.pop %v1798
  %v1800 = vmul.f32 1.0, %v1799
  %v1801 = vtanh.pop %v1792
  %v1802 = vmul.f32 %v1800, %v1609
  %1804 = vrot.lane.b32.xlu0 %v1801, 64
  %v1805 = vpop.permute.xlu0 %1804
  %v1807 = vmul.f32 %v1800, %v1805
  %1809 = vrot.lane.b32.xlu0 %v1807, 32
  %v1810 = vpop.permute.xlu0 %1809
  %v1812 = vadd.f32 %v1802, %v1810
  %v1813 = vtanh.pop %v1812
  %1815 = vrot.lane.b32.xlu0 %v1813, 64
  %v1816 = vpop.permute.xlu0 %1815
  %v1818 = vmul.f32 %v1800, %v1816
  %v1819 = vld [vmem:[%s4] sm:$0xff]
  %v1820 = vld [vmem:[%s4 + $0x8] sm:$0xff]
  %v1821 = vld [vmem:[%s4 + $0x10] sm:$0xff]
  %v1822 = vld [vmem:[%s4 + $0x18] sm:$0xff]
  %v1823 = vld [vmem:[%s5] sm:$0x1]
  %v1825 = vlaneseq
  %v1826 = vshrl.u32 %v1825, 7
  %v1827 = vsub.s32 0, %v1826
  %v1828 = vrot.slane %v1823, %v1827
  %1831 = vrot.lane.b32.xlu0 %v397, 32
  %v1832 = vpop.permute.xlu0 %1831
  %1833 = vrot.lane.b32.xlu0 %v600, 32
  %v1834 = vpop.permute.xlu0 %1833
  %1835 = vrot.lane.b32.xlu0 %v803, 32
  %v1836 = vpop.permute.xlu0 %1835
  %1837 = vrot.lane.b32.xlu0 %v1006, 32
  %v1838 = vpop.permute.xlu0 %1837
  %1839 = vrot.lane.b32.xlu0 %v1209, 32
  %v1840 = vpop.permute.xlu0 %1839
  %1841 = vrot.lane.b32.xlu0 %v1412, 32
  %v1842 = vpop.permute.xlu0 %1841
  %1843 = vrot.lane.b32.xlu0 %v1615, 32
  %v1844 = vpop.permute.xlu0 %1843
  %1845 = vrot.lane.b32.xlu0 %v1818, 32
  %v1846 = vpop.permute.xlu0 %1845
  %v1847 = vsel %vm192, %v1832, 0
  %v1849 = vsel %vm192, %v1834, 0
  %v1851 = vsel %vm192, %v1836, 0
  %v1853 = vsel %vm192, %v1838, 0
  %v1855 = vsel %vm192, %v1840, 0
  %v1857 = vsel %vm192, %v1842, 0
  %v1859 = vsel %vm192, %v1844, 0
  %v1861 = vsel %vm192, %v1846, 0
  %1863 = vmatprep.subr.mxu0 0.0
  %1864 = vmatpush1.msra.mxu0 %v1819
  %1865 = vmatprep.subr.mxu0 0.0
  %1866 = vmatpush1.msra.mxu0 %v1820
  %1867 = vmatprep.subr.mxu0 0.0
  %1868 = vmatpush1.msra.mxu0 %v1821
  %1869 = vmatprep.subr.mxu0 0.0
  %1870 = vmatpush1.msra.mxu0 %v1822
  %1871 = vmatprep.subr.mxu0 0.0
  %1872 = vmatpush1.msra.mxu0 0.0
  %1873 = vmatprep.subr.mxu0 0.0
  %1874 = vmatpush1.msra.mxu0 0.0
  %1875 = vmatprep.subr.mxu0 0.0
  %1876 = vmatpush1.msra.mxu0 0.0
  %1877 = vmatprep.subr.mxu0 0.0
  %1878 = vmatpush1.msra.mxu0 0.0
  %1879 = vmatprep.subr.mxu0 0.0
  %1880 = vmatpush1.msra.mxu0 0.0
  %1881 = vmatprep.subr.mxu0 0.0
  %1882 = vmatpush1.msra.mxu0 0.0
  %1883 = vmatprep.subr.mxu0 0.0
  %1884 = vmatpush1.msra.mxu0 0.0
  %1885 = vmatprep.subr.mxu0 0.0
  %1886 = vmatpush1.msra.mxu0 0.0
  %1887 = vmatprep.subr.mxu0 0.0
  %1888 = vmatpush1.msra.mxu0 0.0
  %1889 = vmatprep.subr.mxu0 0.0
  %1890 = vmatpush1.msra.mxu0 0.0
  %1891 = vmatprep.subr.mxu0 0.0
  %1892 = vmatpush1.msra.mxu0 0.0
  %1893 = vmatprep.subr.mxu0 0.0
  %1894 = vmatpush1.msra.mxu0 0.0
  %1895 = vmatprep.subr.mxu0 0.0
  %1896 = vmatpush1.msra.mxu0 0.0
  %1897 = vmatprep.subr.mxu0 0.0
  %1898 = vmatpush1.msra.mxu0 0.0
  %1899 = vmatprep.subr.mxu0 0.0
  %1900 = vmatpush1.msra.mxu0 0.0
  %1901 = vmatprep.subr.mxu0 0.0
  %1902 = vmatpush1.msra.mxu0 0.0
  %1903 = vmatprep.subr.mxu0 0.0
  %1904 = vmatpush1.msra.mxu0 0.0
  %1905 = vmatprep.subr.mxu0 0.0
  %1906 = vmatpush1.msra.mxu0 0.0
  %1907 = vmatprep.subr.mxu0 0.0
  %1908 = vmatpush1.msra.mxu0 0.0
  %1909 = vmatprep.subr.mxu0 0.0
  %1910 = vmatpush1.msra.mxu0 0.0
  %1911 = vmatprep.subr.mxu0 0.0
  %1912 = vmatpush1.msra.mxu0 0.0
  %1913 = vmatprep.subr.mxu0 0.0
  %1914 = vmatpush1.msra.mxu0 0.0
  %1915 = vmatprep.subr.mxu0 0.0
  %1916 = vmatpush1.msra.mxu0 0.0
  %1917 = vmatprep.subr.mxu0 0.0
  %1918 = vmatpush1.msra.mxu0 0.0
  %1919 = vmatprep.subr.mxu0 0.0
  %1920 = vmatpush1.msra.mxu0 0.0
  %1921 = vmatprep.subr.mxu0 0.0
  %1922 = vmatpush1.msra.mxu0 0.0
  %1923 = vmatprep.subr.mxu0 0.0
  %1924 = vmatpush1.msra.mxu0 0.0
  %1925 = vmatprep.subr.mxu0 0.0
  %1926 = vmatpush1.msra.mxu0 0.0
  %1927 = vmatprep.mubr.f32.mxu0 0.0
  %1928 = vmatmul.mubr.f32.gmra.mrb[0].mxu0 %v1847
  %v1929 = vpop.f32.mrb[0].mxu0
  %v1930 = vadd.f32 %v1828, %v1929
  %v1931 = vpop.f32.mrb[0].mxu0
  %1932 = vmatprep.mubr.f32.mxu0 0.0
  %1933 = vmatmul.mubr.f32.gmra.mrb[0].mxu0 %v1849
  %v1934 = vpop.f32.mrb[0].mxu0
  %v1935 = vadd.f32 %v1828, %v1934
  %v1936 = vpop.f32.mrb[0].mxu0
  %1937 = vmatprep.mubr.f32.mxu0 0.0
  %1938 = vmatmul.mubr.f32.gmra.mrb[0].mxu0 %v1851
  %v1939 = vpop.f32.mrb[0].mxu0
  %v1940 = vadd.f32 %v1828, %v1939
  %v1941 = vpop.f32.mrb[0].mxu0
  %1942 = vmatprep.mubr.f32.mxu0 0.0
  %1943 = vmatmul.mubr.f32.gmra.mrb[0].mxu0 %v1853
  %v1944 = vpop.f32.mrb[0].mxu0
  %v1945 = vadd.f32 %v1828, %v1944
  %v1946 = vpop.f32.mrb[0].mxu0
  %1947 = vmatprep.mubr.f32.mxu0 0.0
  %1948 = vmatmul.mubr.f32.gmra.mrb[0].mxu0 %v1855
  %v1949 = vpop.f32.mrb[0].mxu0
  %v1950 = vadd.f32 %v1828, %v1949
  %v1951 = vpop.f32.mrb[0].mxu0
  %1952 = vmatprep.mubr.f32.mxu0 0.0
  %1953 = vmatmul.mubr.f32.gmra.mrb[0].mxu0 %v1857
  %v1954 = vpop.f32.mrb[0].mxu0
  %v1955 = vadd.f32 %v1828, %v1954
  %v1956 = vpop.f32.mrb[0].mxu0
  %1957 = vmatprep.mubr.f32.mxu0 0.0
  %1958 = vmatmul.mubr.f32.gmra.mrb[0].mxu0 %v1859
  %v1959 = vpop.f32.mrb[0].mxu0
  %v1960 = vadd.f32 %v1828, %v1959
  %v1961 = vpop.f32.mrb[0].mxu0
  %1962 = vmatprep.mubr.f32.mxu0 0.0
  %1963 = vmatmul.mubr.f32.gmra.mrb[0].mxu0 %v1861
  %v1964 = vpop.f32.mrb[0].mxu0
  %v1965 = vadd.f32 %v1828, %v1964
  %v1966 = vpop.f32.mrb[0].mxu0
  %1967 = vdwg.mxu0
  %v1968 = vmax.f32 %v1930, 0.0
  %v1969 = vmax.f32 %v1935, 0.0
  %v1970 = vmax.f32 %v1940, 0.0
  %v1971 = vmax.f32 %v1945, 0.0
  %v1972 = vmax.f32 %v1950, 0.0
  %v1973 = vmax.f32 %v1955, 0.0
  %v1974 = vmax.f32 %v1960, 0.0
  %v1975 = vmax.f32 %v1965, 0.0
  %v1976 = vld [vmem:[%s6] sm:$0x1]
  %v1978 = vlaneseq
  %v1979 = vshrl.u32 %v1978, 7
  %v1980 = vsub.s32 0, %v1979
  %v1981 = vrot.slane %v1976, %v1980
  %v1983 = vmul.f32 %v1968, %v1981
  %v1984 = vmul.f32 %v1969, %v1981
  %v1985 = vmul.f32 %v1970, %v1981
  %v1986 = vmul.f32 %v1971, %v1981
  %v1987 = vmul.f32 %v1972, %v1981
  %v1988 = vmul.f32 %v1973, %v1981
  %v1989 = vmul.f32 %v1974, %v1981
  %v1990 = vmul.f32 %v1975, %v1981
  %vm1991 = vcmask 130048
  %v1992 = vsel %vm1991, %v1983, 0.0
  %1993 = vadd.xlane.f32.xlu0 %v1992
  %v1994 = vpop.xlane.xlu0 %1993
  %v1995 = vsel %vm1991, %v1984, 0.0
  %1996 = vadd.xlane.f32.xlu0 %v1995
  %v1997 = vpop.xlane.xlu0 %1996
  %v1998 = vsel %vm1991, %v1985, 0.0
  %1999 = vadd.xlane.f32.xlu0 %v1998
  %v2000 = vpop.xlane.xlu0 %1999
  %v2001 = vsel %vm1991, %v1986, 0.0
  %2002 = vadd.xlane.f32.xlu0 %v2001
  %v2003 = vpop.xlane.xlu0 %2002
  %v2004 = vsel %vm1991, %v1987, 0.0
  %2005 = vadd.xlane.f32.xlu0 %v2004
  %v2006 = vpop.xlane.xlu0 %2005
  %v2007 = vsel %vm1991, %v1988, 0.0
  %2008 = vadd.xlane.f32.xlu0 %v2007
  %v2009 = vpop.xlane.xlu0 %2008
  %v2010 = vsel %vm1991, %v1989, 0.0
  %2011 = vadd.xlane.f32.xlu0 %v2010
  %v2012 = vpop.xlane.xlu0 %2011
  %v2013 = vsel %vm1991, %v1990, 0.0
  %2014 = vadd.xlane.f32.xlu0 %v2013
  %v2015 = vpop.xlane.xlu0 %2014
  %v2016 = vld [vmem:[#allocation2] sm:$0x1]
  %v2018 = vlaneseq
  %v2019 = vshrl.u32 %v2018, 7
  %v2020 = vsub.s32 0, %v2019
  %v2021 = vrot.slane %v2016, %v2020
  %2022 = vset.pattern.permute.xlu0 0
  %2023 = vperm.xlu0 %2022, %v2021
  %v2024 = vpop.permute.xlu0 %2023
  %v2026 = vadd.f32 %v1994, %v2024
  %v2027 = vadd.f32 %v1997, %v2024
  %v2028 = vadd.f32 %v2000, %v2024
  %v2029 = vadd.f32 %v2003, %v2024
  %v2030 = vadd.f32 %v2006, %v2024
  %v2031 = vadd.f32 %v2009, %v2024
  %v2032 = vadd.f32 %v2012, %v2024
  %v2033 = vadd.f32 %v2015, %v2024
  %v2034 = vxor.u32 %v2026, 2147483648
  %v2035 = vxor.u32 %v2027, 2147483648
  %v2036 = vxor.u32 %v2028, 2147483648
  %v2037 = vxor.u32 %v2029, 2147483648
  %v2038 = vxor.u32 %v2030, 2147483648
  %v2039 = vxor.u32 %v2031, 2147483648
  %v2040 = vxor.u32 %v2032, 2147483648
  %v2041 = vxor.u32 %v2033, 2147483648
  %v2042 = vmul.f32 %v2034, 1.442695
  %v2043 = vpow.pop %v2042
  %v2044 = vmul.f32 %v2035, 1.442695
  %v2045 = vpow.pop %v2044
  %v2046 = vmul.f32 %v2036, 1.442695
  %v2047 = vpow.pop %v2046
  %v2048 = vmul.f32 %v2037, 1.442695
  %v2049 = vpow.pop %v2048
  %v2050 = vmul.f32 %v2038, 1.442695
  %v2051 = vpow.pop %v2050
  %v2052 = vmul.f32 %v2039, 1.442695
  %v2053 = vpow.pop %v2052
  %v2054 = vmul.f32 %v2040, 1.442695
  %v2055 = vpow.pop %v2054
  %v2056 = vmul.f32 %v2041, 1.442695
  %v2057 = vpow.pop %v2056
  %v2058 = vadd.f32 %v2043, 1.0
  %v2059 = vadd.f32 %v2045, 1.0
  %v2060 = vadd.f32 %v2047, 1.0
  %v2061 = vadd.f32 %v2049, 1.0
  %v2062 = vadd.f32 %v2051, 1.0
  %v2063 = vadd.f32 %v2053, 1.0
  %v2064 = vadd.f32 %v2055, 1.0
  %v2065 = vadd.f32 %v2057, 1.0
  %v2066 = vrcp.pop %v2058
  %v2067 = vmul.f32 1.0, %v2066
  %v2068 = vrcp.pop %v2059
  %v2069 = vmul.f32 1.0, %v2068
  %v2070 = vrcp.pop %v2060
  %v2071 = vmul.f32 1.0, %v2070
  %v2072 = vrcp.pop %v2061
  %v2073 = vmul.f32 1.0, %v2072
  %v2074 = vrcp.pop %v2062
  %v2075 = vmul.f32 1.0, %v2074
  %v2076 = vrcp.pop %v2063
  %v2077 = vmul.f32 1.0, %v2076
  %v2078 = vrcp.pop %v2064
  %v2079 = vmul.f32 1.0, %v2078
  %v2080 = vrcp.pop %v2065
  %v2081 = vmul.f32 1.0, %v2080
  %v2090 = vlaneseq
  %v2091 = vand.u32 %v2090, 127
  %v2092 = vlaneseq
  %v2093 = vshrl.u32 %v2092, 7
  %v2094 = vsub.s32 %v2091, %v2093
  %v2095 = vrot.slane %v2067, %v2094
  %v2096 = vlaneseq
  %v2097 = vshrl.u32 %v2096, 7
  %v2098 = vsub.s32 %v2091, %v2097
  %v2099 = vrot.slane %v2069, %v2098
  %v2100 = vlaneseq
  %v2101 = vshrl.u32 %v2100, 7
  %v2102 = vsub.s32 %v2091, %v2101
  %v2103 = vrot.slane %v2071, %v2102
  %v2104 = vlaneseq
  %v2105 = vshrl.u32 %v2104, 7
  %v2106 = vsub.s32 %v2091, %v2105
  %v2107 = vrot.slane %v2073, %v2106
  %v2108 = vlaneseq
  %v2109 = vshrl.u32 %v2108, 7
  %v2110 = vsub.s32 %v2091, %v2109
  %v2111 = vrot.slane %v2075, %v2110
  %v2112 = vlaneseq
  %v2113 = vshrl.u32 %v2112, 7
  %v2114 = vsub.s32 %v2091, %v2113
  %v2115 = vrot.slane %v2077, %v2114
  %v2116 = vlaneseq
  %v2117 = vshrl.u32 %v2116, 7
  %v2118 = vsub.s32 %v2091, %v2117
  %v2119 = vrot.slane %v2079, %v2118
  %v2120 = vlaneseq
  %v2121 = vshrl.u32 %v2120, 7
  %v2122 = vsub.s32 %v2091, %v2121
  %v2123 = vrot.slane %v2081, %v2122
  %vm2124 = vcmask 1041409
  %v2125 = vsel %vm2124, %v2099, %v2095
  %vm2126 = vcmask 1042434
  %v2127 = vsel %vm2126, %v2103, %v2125
  %vm2128 = vcmask 1043459
  %v2129 = vsel %vm2128, %v2107, %v2127
  %vm2130 = vcmask 1044484
  %v2131 = vsel %vm2130, %v2111, %v2129
  %vm2132 = vcmask 1045509
  %v2133 = vsel %vm2132, %v2115, %v2131
  %vm2134 = vcmask 1046534
  %v2135 = vsel %vm2134, %v2119, %v2133
  %vm2136 = vcmask 1047559
  %v2137 = vsel %vm2136, %v2123, %v2135
  %vm2139 = vcmask 64512
  %2140 = vst.msk [vmem:[%s8] sm:$0xff] %vm2139, %v2137
  // Predicated region
  $region34: #{domain_grammar_forward.1} parent=0 // pred_check
    _
  $region35: #{domain_grammar_forward.1} parent=0 // pred_check_branch
    %2142 = sbr.rel (0) target = $region37
  $region36: #{domain_grammar_forward.1} parent=0 // pred_region
    _
  $region37: #{domain_grammar_forward.1} parent=0 // pred_fallthru
    _
  // Predicated region
  $region38: #{domain_grammar_forward.1} parent=0 // pred_check
    _
  $region39: #{domain_grammar_forward.1} parent=0 // pred_check_branch
    %2144 = sbr.rel (0) target = $region41
  $region40: #{domain_grammar_forward.1} parent=0 // pred_region
    _
  $region41: #{domain_grammar_forward.1} parent=0 // pred_fallthru
    _

</llo_original>
